<compile_context>
chip_gen: v7x
topology: tpu7x:2x2x1
jax: 0.10.0
libtpu: 0.0.40
codegen_flags: <defaults>
</compile_context>

<pallas_src>
import numpy as np
import jax
import jax.numpy as jnp
from jax.experimental import pallas as pl
from jax.experimental.pallas import tpu as pltpu

NUM_FEATURES = 20
NUM_CLASSES = 5
C1, C2, H = 16, 32, 64   # conv1 out ch, conv2 out ch, fc1 hidden
K = 3                    # conv kernel size (padding=1)
L = NUM_FEATURES
OUT_PAD = 128            # lane-dense fc2 output width (>= NUM_CLASSES)


def _fused_kernel(x_ref, w1b_ref, b1e_ref, w2b_ref, b2e_ref,
                  wf1_ref, bf1_ref, wf2_ref, bf2_ref, out_ref):
    # conv1 as a banded matmul.  The pad positions (p=0 and p=L+1) have all-zero
    # weight columns and zero bias, so relu leaves exact zeros there -> conv2's
    # padding=1 comes for free, no mask / concat needed.
    # All matmuls: bf16 MXU inputs, f32 accumulation; bias+relu stay f32 on VPU.
    h1 = jnp.dot(x_ref[...].astype(jnp.bfloat16), w1b_ref[...],
                 preferred_element_type=jnp.float32)
    h1 = jnp.maximum(h1 + b1e_ref[...], 0.0)                       # (Bt, (L+2)*C1)

    # conv2 as a banded matmul; output layout is the flattened (l*C2 + c2)
    # index, i.e. exactly what the (pre-permuted) fc1 weights consume.
    h2 = jnp.dot(h1.astype(jnp.bfloat16), w2b_ref[...],
                 preferred_element_type=jnp.float32)
    h2 = jnp.maximum(h2 + b2e_ref[...], 0.0)                       # (Bt, L*C2) = (Bt, 640)

    h3 = jnp.dot(h2.astype(jnp.bfloat16), wf1_ref[...],
                 preferred_element_type=jnp.float32)
    h3 = jnp.maximum(h3 + bf1_ref[...], 0.0)                       # (Bt, H)

    # TODO(synk): nn.Dropout(p=0.15) is identity in eval mode; a training-mode
    # path would use pltpu.prng_seed / pltpu.prng_random_bits masking.
    out_ref[...] = (jnp.dot(h3.astype(jnp.bfloat16), wf2_ref[...],
                            preferred_element_type=jnp.float32)
                    + bf2_ref[...])                                # (Bt, OUT_PAD)


def _round_up(x, m):
    return (x + m - 1) // m * m


def _cdiv(a, b):
    return (a + b - 1) // b


def curve_cnn_forward(x, kernel_params, *, b_tile=1024):
    """Fused forward.  x: (B, NUM_FEATURES) f32 -> (B, NUM_CLASSES) f32."""
    w1b, b1e, w2b, b2e, wf1, bf1, wf2, bf2 = kernel_params
    B, Lx = x.shape
    assert Lx == L

    # Padding-aware tile selection: balance the batch across grid steps instead
    # of padding up to a fixed tile.  Keep >= 2 steps for moderate batches so
    # both v7x TensorCores get work on the "parallel" axis.
    n_steps = max(1, _cdiv(B, b_tile))
    if n_steps == 1 and B > 8:
        n_steps = 2
    bt = _round_up(_cdiv(B, n_steps), 8)
    b_pad = n_steps * bt
    if b_pad != B:
        x = jnp.pad(x, ((0, b_pad - B), (0, 0)))

    # Advisory cost estimate so XLA doesn't treat the custom call as zero-cost.
    flops = 2 * b_pad * (L * (L + 2) * C1
                         + (L + 2) * C1 * (L * C2)
                         + (L * C2) * H
                         + H * OUT_PAD)
    weight_bytes = sum(int(np.prod(a.shape)) * a.dtype.itemsize
                       for a in (w1b, b1e, w2b, b2e, wf1, bf1, wf2, bf2))
    bytes_accessed = b_pad * L * 4 + b_pad * OUT_PAD * 4 + weight_bytes
    cost = pl.CostEstimate(flops=flops, transcendentals=0,
                           bytes_accessed=bytes_accessed)

    cp_kwargs = dict(dimension_semantics=("parallel",))
    if bt > 1024:
        # v5e's default scoped VMEM is only 16 MiB; stay under v7x's 64 MiB phys.
        cp_kwargs["vmem_limit_bytes"] = 48 * 1024 * 1024

    out = pl.pallas_call(
        _fused_kernel,
        out_shape=jax.ShapeDtypeStruct((b_pad, OUT_PAD), jnp.float32),
        grid=(n_steps,),
        in_specs=[
            pl.BlockSpec((bt, L), lambda i: (i, 0)),                       # x tile
            pl.BlockSpec((L, (L + 2) * C1), lambda i: (0, 0)),             # conv1 band (bf16)
            pl.BlockSpec((1, (L + 2) * C1), lambda i: (0, 0)),             # conv1 bias (padded)
            pl.BlockSpec(((L + 2) * C1, L * C2), lambda i: (0, 0)),        # conv2 band (bf16)
            pl.BlockSpec((1, L * C2), lambda i: (0, 0)),                   # conv2 bias (tiled)
            pl.BlockSpec((L * C2, H), lambda i: (0, 0)),                   # fc1 (permuted, bf16)
            pl.BlockSpec((1, H), lambda i: (0, 0)),                        # fc1 bias
            pl.BlockSpec((H, OUT_PAD), lambda i: (0, 0)),                  # fc2 (lane-padded, bf16)
            pl.BlockSpec((1, OUT_PAD), lambda i: (0, 0)),                  # fc2 bias (lane-padded)
        ],
        out_specs=pl.BlockSpec((bt, OUT_PAD), lambda i: (i, 0)),
        compiler_params=pltpu.CompilerParams(**cp_kwargs),
        cost_estimate=cost,
    )(x, w1b, b1e, w2b, b2e, wf1, bf1, wf2, bf2)

    return out[:B, :NUM_CLASSES]


def init_params(key):
    """Deterministic synthetic parameters in PyTorch layout + fused-kernel layout."""
    ks = jax.random.split(key, 8)
    conv1_w = jax.random.normal(ks[0], (C1, 1, K), jnp.float32) * 0.1    # (out, in, k)
    conv1_b = jax.random.normal(ks[1], (C1,), jnp.float32) * 0.1
    conv2_w = jax.random.normal(ks[2], (C2, C1, K), jnp.float32) * 0.1
    conv2_b = jax.random.normal(ks[3], (C2,), jnp.float32) * 0.1
    fc1_w = jax.random.normal(ks[4], (H, C2 * L), jnp.float32) * 0.05    # (out, in)
    fc1_b = jax.random.normal(ks[5], (H,), jnp.float32) * 0.05
    fc2_w = jax.random.normal(ks[6], (NUM_CLASSES, H), jnp.float32) * 0.05
    fc2_b = jax.random.normal(ks[7], (NUM_CLASSES,), jnp.float32) * 0.05
    torch_params = (conv1_w, conv1_b, conv2_w, conv2_b, fc1_w, fc1_b, fc2_w, fc2_b)

    # ---- conv1 as a banded matrix: x (L) -> padded h1 positions p in 0..L+1 ----
    w1_np = np.asarray(conv1_w)       # (C1, 1, K)
    b1_np = np.asarray(conv1_b)
    w1b = np.zeros((L, (L + 2) * C1), np.float32)
    b1e = np.zeros((1, (L + 2) * C1), np.float32)
    for p in range(1, L + 1):         # p=0 and p=L+1 stay all-zero (= conv2's padding)
        b1e[0, p * C1:(p + 1) * C1] = b1_np
        for k in range(K):
            j = p - 2 + k             # unpadded x index feeding tap k of output p
            if 0 <= j < L:
                w1b[j, p * C1:(p + 1) * C1] = w1_np[:, 0, k]

    # ---- conv2 as a banded matrix: padded h1 ((L+2)*C1) -> h2 flat (l*C2 + c2) ----
    w2_np = np.asarray(conv2_w)       # (C2, C1, K)
    b2_np = np.asarray(conv2_b)
    w2b = np.zeros(((L + 2) * C1, L * C2), np.float32)
    for l in range(L):
        for k in range(K):
            p = l + k                 # padded h1 position feeding tap k of output l
            w2b[p * C1:(p + 1) * C1, l * C2:(l + 1) * C2] = w2_np[:, :, k].T
    b2e = np.tile(b2_np, L)[None, :]  # (1, L*C2), index l*C2 + c2

    # ---- fc1: permute columns from PyTorch flatten (c2*L + l) to kernel (l*C2 + c2) ----
    fc1_np = np.asarray(fc1_w).reshape(H, C2, L)
    wf1 = np.ascontiguousarray(np.transpose(fc1_np, (2, 1, 0)).reshape(L * C2, H))
    bf1 = np.asarray(fc1_b)[None, :]

    # ---- fc2: transpose and zero-pad to 128 output lanes (lane-dense store) ----
    wf2 = np.zeros((H, OUT_PAD), np.float32)
    wf2[:, :NUM_CLASSES] = np.asarray(fc2_w).T
    bf2 = np.zeros((1, OUT_PAD), np.float32)
    bf2[0, :NUM_CLASSES] = np.asarray(fc2_b)

    # Weight matrices in bf16 (MXU native rate, half the VMEM); biases stay f32.
    kernel_params = (
        jnp.asarray(w1b, jnp.bfloat16),
        jnp.asarray(b1e, jnp.float32),
        jnp.asarray(w2b, jnp.bfloat16),
        jnp.asarray(b2e, jnp.float32),
        jnp.asarray(wf1, jnp.bfloat16),
        jnp.asarray(bf1, jnp.float32),
        jnp.asarray(wf2, jnp.bfloat16),
        jnp.asarray(bf2, jnp.float32),
    )
    return torch_params, kernel_params


def reference_forward(x, torch_params):
    """Pure-JAX f32 reference matching the PyTorch forward (eval mode)."""
    conv1_w, conv1_b, conv2_w, conv2_b, fc1_w, fc1_b, fc2_w, fc2_b = torch_params
    h = x[:, None, :]                                               # (B, 1, L)
    h = jax.lax.conv_general_dilated(h, conv1_w, (1,), ((1, 1),),
                                     dimension_numbers=("NCH", "OIH", "NCH"))
    h = jax.nn.relu(h + conv1_b[None, :, None])
    h = jax.lax.conv_general_dilated(h, conv2_w, (1,), ((1, 1),),
                                     dimension_numbers=("NCH", "OIH", "NCH"))
    h = jax.nn.relu(h + conv2_b[None, :, None])
    flat = h.reshape(h.shape[0], -1)                                # (B, C2*L), PyTorch order
    h = jax.nn.relu(flat @ fc1_w.T + fc1_b)
    return h @ fc2_w.T + fc2_b


if __name__ == "__main__":
    key = jax.random.PRNGKey(0)
    kp, kx = jax.random.split(key)
    torch_params, kernel_params = init_params(kp)

    B = 4
    x = jax.random.normal(kx, (B, NUM_FEATURES), jnp.float32)

    out = jax.jit(curve_cnn_forward)(x, kernel_params)
    out = jax.block_until_ready(out)

    ref = reference_forward(x, torch_params)
    assert out.shape == (B, NUM_CLASSES)
    # bf16 weights/activations on the MXU -> loosened tolerance vs f32 reference.
    assert jnp.allclose(out, ref, atol=5e-2, rtol=5e-2), (out, ref)
    print("KERNEL_OK")
</pallas_src>

<mosaic_0001>
module attributes {stable_mosaic.version = 11 : i64} {
  func.func @_fused_kernel(%arg0: i32, %arg1: memref<8x20xf32, #tpu.memory_space<vmem>>, %arg2: memref<20x352xbf16, #tpu.memory_space<vmem>>, %arg3: memref<1x352xf32, #tpu.memory_space<vmem>>, %arg4: memref<352x640xbf16, #tpu.memory_space<vmem>>, %arg5: memref<1x640xf32, #tpu.memory_space<vmem>>, %arg6: memref<640x64xbf16, #tpu.memory_space<vmem>>, %arg7: memref<1x64xf32, #tpu.memory_space<vmem>>, %arg8: memref<64x128xbf16, #tpu.memory_space<vmem>>, %arg9: memref<1x128xf32, #tpu.memory_space<vmem>>, %arg10: memref<8x128xf32, #tpu.memory_space<vmem>>) attributes {dimension_semantics = [#tpu.dimension_semantics<parallel>], iteration_bounds = array<i64: 1>, scalar_prefetch = 0 : i64, scratch_operands = 0 : i64, tpu.core_type = #tpu.core_type<tc>, window_params = [{transform_indices = @transform_0, window_bounds = array<i64: 8, 20>}, {pipeline_mode = #tpu.pipeline_mode<synchronous>, transform_indices = @transform_1, window_bounds = array<i64: 20, 352>}, {pipeline_mode = #tpu.pipeline_mode<synchronous>, transform_indices = @transform_2, window_bounds = array<i64: 1, 352>}, {pipeline_mode = #tpu.pipeline_mode<synchronous>, transform_indices = @transform_3, window_bounds = array<i64: 352, 640>}, {pipeline_mode = #tpu.pipeline_mode<synchronous>, transform_indices = @transform_4, window_bounds = array<i64: 1, 640>}, {pipeline_mode = #tpu.pipeline_mode<synchronous>, transform_indices = @transform_5, window_bounds = array<i64: 640, 64>}, {pipeline_mode = #tpu.pipeline_mode<synchronous>, transform_indices = @transform_6, window_bounds = array<i64: 1, 64>}, {pipeline_mode = #tpu.pipeline_mode<synchronous>, transform_indices = @transform_7, window_bounds = array<i64: 64, 128>}, {pipeline_mode = #tpu.pipeline_mode<synchronous>, transform_indices = @transform_8, window_bounds = array<i64: 1, 128>}, {transform_indices = @transform_9, window_bounds = array<i64: 8, 128>}]} {
    %c0 = arith.constant 0 : index
    %c0_0 = arith.constant 0 : index
    %0 = vector.load %arg1[%c0, %c0_0] : memref<8x20xf32, #tpu.memory_space<vmem>>, vector<8x20xf32>
    %1 = arith.truncf %0 : vector<8x20xf32> to vector<8x20xbf16>
    %c0_1 = arith.constant 0 : index
    %c0_2 = arith.constant 0 : index
    %2 = vector.load %arg2[%c0_1, %c0_2] : memref<20x352xbf16, #tpu.memory_space<vmem>>, vector<20x352xbf16>
    %cst = arith.constant dense<0.000000e+00> : vector<8x352xf32>
    %3 = tpu.matmul %1, %2, %cst {dimension_numbers = #tpu.dot_dimension_numbers<[1], [0], [0], [1], [0, 0, 1, 1], [], []>} : vector<8x20xbf16>, vector<20x352xbf16>, vector<8x352xf32> -> vector<8x352xf32>
    %c0_3 = arith.constant 0 : index
    %c0_4 = arith.constant 0 : index
    %4 = vector.load %arg3[%c0_3, %c0_4] : memref<1x352xf32, #tpu.memory_space<vmem>>, vector<1x352xf32>
    %5 = vector.broadcast %4 : vector<1x352xf32> to vector<8x352xf32>
    %6 = arith.addf %3, %5 : vector<8x352xf32>
    %cst_5 = arith.constant 0.000000e+00 : f32
    %7 = vector.broadcast %cst_5 : f32 to vector<8x352xf32>
    %8 = arith.maximumf %6, %7 : vector<8x352xf32>
    %9 = arith.truncf %8 : vector<8x352xf32> to vector<8x352xbf16>
    %c0_6 = arith.constant 0 : index
    %c0_7 = arith.constant 0 : index
    %10 = vector.load %arg4[%c0_6, %c0_7] : memref<352x640xbf16, #tpu.memory_space<vmem>>, vector<352x640xbf16>
    %cst_8 = arith.constant dense<0.000000e+00> : vector<8x640xf32>
    %11 = tpu.matmul %9, %10, %cst_8 {dimension_numbers = #tpu.dot_dimension_numbers<[1], [0], [0], [1], [0, 0, 1, 1], [], []>} : vector<8x352xbf16>, vector<352x640xbf16>, vector<8x640xf32> -> vector<8x640xf32>
    %c0_9 = arith.constant 0 : index
    %c0_10 = arith.constant 0 : index
    %12 = vector.load %arg5[%c0_9, %c0_10] : memref<1x640xf32, #tpu.memory_space<vmem>>, vector<1x640xf32>
    %13 = vector.broadcast %12 : vector<1x640xf32> to vector<8x640xf32>
    %14 = arith.addf %11, %13 : vector<8x640xf32>
    %cst_11 = arith.constant 0.000000e+00 : f32
    %15 = vector.broadcast %cst_11 : f32 to vector<8x640xf32>
    %16 = arith.maximumf %14, %15 : vector<8x640xf32>
    %17 = arith.truncf %16 : vector<8x640xf32> to vector<8x640xbf16>
    %c0_12 = arith.constant 0 : index
    %c0_13 = arith.constant 0 : index
    %18 = vector.load %arg6[%c0_12, %c0_13] : memref<640x64xbf16, #tpu.memory_space<vmem>>, vector<640x64xbf16>
    %cst_14 = arith.constant dense<0.000000e+00> : vector<8x64xf32>
    %19 = tpu.matmul %17, %18, %cst_14 {dimension_numbers = #tpu.dot_dimension_numbers<[1], [0], [0], [1], [0, 0, 1, 1], [], []>} : vector<8x640xbf16>, vector<640x64xbf16>, vector<8x64xf32> -> vector<8x64xf32>
    %c0_15 = arith.constant 0 : index
    %c0_16 = arith.constant 0 : index
    %20 = vector.load %arg7[%c0_15, %c0_16] : memref<1x64xf32, #tpu.memory_space<vmem>>, vector<1x64xf32>
    %21 = vector.broadcast %20 : vector<1x64xf32> to vector<8x64xf32>
    %22 = arith.addf %19, %21 : vector<8x64xf32>
    %cst_17 = arith.constant 0.000000e+00 : f32
    %23 = vector.broadcast %cst_17 : f32 to vector<8x64xf32>
    %24 = arith.maximumf %22, %23 : vector<8x64xf32>
    %25 = arith.truncf %24 : vector<8x64xf32> to vector<8x64xbf16>
    %c0_18 = arith.constant 0 : index
    %c0_19 = arith.constant 0 : index
    %26 = vector.load %arg8[%c0_18, %c0_19] : memref<64x128xbf16, #tpu.memory_space<vmem>>, vector<64x128xbf16>
    %cst_20 = arith.constant dense<0.000000e+00> : vector<8x128xf32>
    %27 = tpu.matmul %25, %26, %cst_20 {dimension_numbers = #tpu.dot_dimension_numbers<[1], [0], [0], [1], [0, 0, 1, 1], [], []>} : vector<8x64xbf16>, vector<64x128xbf16>, vector<8x128xf32> -> vector<8x128xf32>
    %c0_21 = arith.constant 0 : index
    %c0_22 = arith.constant 0 : index
    %28 = vector.load %arg9[%c0_21, %c0_22] : memref<1x128xf32, #tpu.memory_space<vmem>>, vector<1x128xf32>
    %29 = vector.broadcast %28 : vector<1x128xf32> to vector<8x128xf32>
    %30 = arith.addf %27, %29 : vector<8x128xf32>
    %c0_23 = arith.constant 0 : index
    %c0_24 = arith.constant 0 : index
    %31 = vector.load %arg10[%c0_23, %c0_24] : memref<8x128xf32, #tpu.memory_space<vmem>>, vector<8x128xf32>
    tpu.vector_store %arg10[%c0_23, %c0_24], %30 {strides = array<i32>} : memref<8x128xf32, #tpu.memory_space<vmem>>, vector<8x128xf32>,
    return
  }
  func.func @transform_0(%arg0: i32) -> (i32, i32) {
    %c0_i32 = arith.constant 0 : i32
    %c0_i32_0 = arith.constant 0 : i32
    return %arg0, %c0_i32 : i32, i32
  }
  func.func @transform_1(%arg0: i32) -> (i32, i32) {
    %c0_i32 = arith.constant 0 : i32
    %c0_i32_0 = arith.constant 0 : i32
    %c0_i32_1 = arith.constant 0 : i32
    return %c0_i32, %c0_i32_0 : i32, i32
  }
  func.func @transform_2(%arg0: i32) -> (i32, i32) {
    %c0_i32 = arith.constant 0 : i32
    %c0_i32_0 = arith.constant 0 : i32
    %c0_i32_1 = arith.constant 0 : i32
    return %c0_i32, %c0_i32_0 : i32, i32
  }
  func.func @transform_3(%arg0: i32) -> (i32, i32) {
    %c0_i32 = arith.constant 0 : i32
    %c0_i32_0 = arith.constant 0 : i32
    %c0_i32_1 = arith.constant 0 : i32
    return %c0_i32, %c0_i32_0 : i32, i32
  }
  func.func @transform_4(%arg0: i32) -> (i32, i32) {
    %c0_i32 = arith.constant 0 : i32
    %c0_i32_0 = arith.constant 0 : i32
    %c0_i32_1 = arith.constant 0 : i32
    return %c0_i32, %c0_i32_0 : i32, i32
  }
  func.func @transform_5(%arg0: i32) -> (i32, i32) {
    %c0_i32 = arith.constant 0 : i32
    %c0_i32_0 = arith.constant 0 : i32
    %c0_i32_1 = arith.constant 0 : i32
    return %c0_i32, %c0_i32_0 : i32, i32
  }
  func.func @transform_6(%arg0: i32) -> (i32, i32) {
    %c0_i32 = arith.constant 0 : i32
    %c0_i32_0 = arith.constant 0 : i32
    %c0_i32_1 = arith.constant 0 : i32
    return %c0_i32, %c0_i32_0 : i32, i32
  }
  func.func @transform_7(%arg0: i32) -> (i32, i32) {
    %c0_i32 = arith.constant 0 : i32
    %c0_i32_0 = arith.constant 0 : i32
    %c0_i32_1 = arith.constant 0 : i32
    return %c0_i32, %c0_i32_0 : i32, i32
  }
  func.func @transform_8(%arg0: i32) -> (i32, i32) {
    %c0_i32 = arith.constant 0 : i32
    %c0_i32_0 = arith.constant 0 : i32
    %c0_i32_1 = arith.constant 0 : i32
    return %c0_i32, %c0_i32_0 : i32, i32
  }
  func.func @transform_9(%arg0: i32) -> (i32, i32) {
    %c0_i32 = arith.constant 0 : i32
    %c0_i32_0 = arith.constant 0 : i32
    return %arg0, %c0_i32 : i32, i32
  }
}

</mosaic_0001>

<llo_original>
// kernel: curve_cnn_forward.1
$region0: #{curve_cnn_forward.1}
  #allocation0 [shape = 'u32[]', space=smem, size = 0x4, offset = 0x4, fixed_abs, tag = 'smem constant byte address 0x4 - core index']
  #allocation1 [shape = 'u32[144,128]{1,0:T(1,128)}', space=vmem, size = 0x12000, scoped, tag = 'internal scratch']
  %s0 = inlined_call_operand.vmem [shape: f32[8,20], index: 0, kind: input, shape index: {}]
  %s1 = inlined_call_operand.vmem [shape: bf16[20,352], index: 1, kind: input, shape index: {}]
  %s2 = inlined_call_operand.vmem [shape: f32[1,352], index: 2, kind: input, shape index: {}]
  %s3 = inlined_call_operand.hbm [shape: bf16[352,640], index: 3, kind: input, shape index: {}]
  %s4 = inlined_call_operand.vmem [shape: f32[1,640], index: 4, kind: input, shape index: {}]
  %s5 = inlined_call_operand.vmem [shape: bf16[640,64], index: 5, kind: input, shape index: {}]
  %s6 = inlined_call_operand.vmem [shape: f32[1,64], index: 6, kind: input, shape index: {}]
  %s7 = inlined_call_operand.vmem [shape: bf16[64,128], index: 7, kind: input, shape index: {}]
  %s8 = inlined_call_operand.vmem [shape: f32[1,128], index: 8, kind: input, shape index: {}]
  %s9 = inlined_call_operand.vmem [shape: f32[8,128], index: 9, kind: output, shape index: {}]
  %s10 = sld [smem:[#allocation0]]
  $region50: #{curve_cnn_forward.1} parent=0
    _
  %s12 = ssub.s32 1, %s10
  %s13 = scalar_select 0, %s12, %s10
  $region1: #{curve_cnn_forward.1} parent=0
    #allocation2 [shape = 'u8[450560]{0}', space=vmem, size = 0x6e000, scoped, tag = 'input window, operand 3, single buffered']
    #allocation3 [shape = 's32[1]{0}', space=sflag, size = 0x4, scoped, tag = 'scoped memory for curve_cnn_forward.1']
    %14 = vsyncpa [#allocation3], 0
    // Predicated region
    $region2: #{curve_cnn_forward.1} parent=1 // pred_check
      _
    $region3: #{curve_cnn_forward.1} parent=1 // pred_check_branch
      %16 = sbr.rel (0) target = $region5
    $region4: #{curve_cnn_forward.1} parent=1 // pred_region
      _
    $region5: #{curve_cnn_forward.1} parent=1 // pred_fallthru
      _
    // Predicated region
    $region6: #{curve_cnn_forward.1} parent=1 // pred_check
      _
    $region7: #{curve_cnn_forward.1} parent=1 // pred_check_branch
      %18 = sbr.rel (0) target = $region9
    $region8: #{curve_cnn_forward.1} parent=1 // pred_region
      _
    $region9: #{curve_cnn_forward.1} parent=1 // pred_fallthru
      _
    // Predicated region
    $region10: #{curve_cnn_forward.1} parent=1 // pred_check
      _
    $region11: #{curve_cnn_forward.1} parent=1 // pred_check_branch
      %20 = sbr.rel (0) target = $region13
    $region12: #{curve_cnn_forward.1} parent=1 // pred_region
      _
    $region13: #{curve_cnn_forward.1} parent=1 // pred_fallthru
      _
    // Predicated region
    $region14: #{curve_cnn_forward.1} parent=1 // pred_check
      _
    $region15: #{curve_cnn_forward.1} parent=1 // pred_check_branch
      %22 = sbr.rel (0) target = $region17
    $region16: #{curve_cnn_forward.1} parent=1 // pred_region
      %s24 = ssub.s32 14080, 14080
      %25 = vsyncadd [#allocation3], %s24
      %s26 = sshll.u32 [#allocation2], 4
      %s27 = int_to_ptr.vmem [resolvable:$true] %s26
      %32 = dma.hbm_to_vmem [thread:$0]  %s3, 14080, %s27, [#allocation3], 320, 320, 20
    $region17: #{curve_cnn_forward.1} parent=1 // pred_fallthru
      _
    // Predicated region
    $region18: #{curve_cnn_forward.1} parent=1 // pred_check
      _
    $region19: #{curve_cnn_forward.1} parent=1 // pred_check_branch
      %34 = sbr.rel (0) target = $region21
    $region20: #{curve_cnn_forward.1} parent=1 // pred_region
      _
    $region21: #{curve_cnn_forward.1} parent=1 // pred_fallthru
      _
    // Predicated region
    $region22: #{curve_cnn_forward.1} parent=1 // pred_check
      _
    $region23: #{curve_cnn_forward.1} parent=1 // pred_check_branch
      %36 = sbr.rel (0) target = $region25
    $region24: #{curve_cnn_forward.1} parent=1 // pred_region
      _
    $region25: #{curve_cnn_forward.1} parent=1 // pred_fallthru
      _
    // Predicated region
    $region26: #{curve_cnn_forward.1} parent=1 // pred_check
      _
    $region27: #{curve_cnn_forward.1} parent=1 // pred_check_branch
      %38 = sbr.rel (0) target = $region29
    $region28: #{curve_cnn_forward.1} parent=1 // pred_region
      _
    $region29: #{curve_cnn_forward.1} parent=1 // pred_fallthru
      _
    // Predicated region
    $region30: #{curve_cnn_forward.1} parent=1 // pred_check
      _
    $region31: #{curve_cnn_forward.1} parent=1 // pred_check_branch
      %40 = sbr.rel (0) target = $region33
    $region32: #{curve_cnn_forward.1} parent=1 // pred_region
      _
    $region33: #{curve_cnn_forward.1} parent=1 // pred_fallthru
      _
    // Predicated region
    $region34: #{curve_cnn_forward.1} parent=1 // pred_check
      _
    $region35: #{curve_cnn_forward.1} parent=1 // pred_check_branch
      %42 = sbr.rel (0) target = $region37
    $region36: #{curve_cnn_forward.1} parent=1 // pred_region
      _
    $region37: #{curve_cnn_forward.1} parent=1 // pred_fallthru
      _
    // Predicated region
    $region38: #{curve_cnn_forward.1} parent=1 // pred_check
      _
    $region39: #{curve_cnn_forward.1} parent=1 // pred_check_branch
      %44 = sbr.rel (0) target = $region41
    $region40: #{curve_cnn_forward.1} parent=1 // pred_region
      %45 = dma.done [#allocation3], 14080
    $region41: #{curve_cnn_forward.1} parent=1 // pred_fallthru
      _
    %v47 = vld [vmem:[%s0] sm:$0xff]
    %v48 = vpack.c.bf16 %v47, %v47
    %v49 = vld [vmem:[%s1] sm:$0xff]
    %v50 = vld [vmem:[%s1 + $0x8] sm:$0xf]
    %v51 = vld [vmem:[%s1 + $0xc] sm:$0xff]
    %v52 = vld [vmem:[%s1 + $0x14] sm:$0xf]
    %v53 = vld [vmem:[%s1 + $0x18] sm:$0x33]
    %v54 = vld [vmem:[%s1 + $0x20] sm:$0x3]
    %v55 = vld [vmem:[%s2] sm:$0x7]
    %v57 = vlaneseq
    %v58 = vshrl.u32 %v57, 7
    %v59 = vsub.s32 0, %v58
    %v60 = vrot.slane %v55, %v59
    %v61 = vlaneseq
    %v62 = vshrl.u32 %v61, 7
    %v63 = vsub.s32 1, %v62
    %v64 = vrot.slane %v55, %v63
    %v65 = vlaneseq
    %v66 = vshrl.u32 %v65, 7
    %v67 = vsub.s32 2, %v66
    %v68 = vrot.slane %v55, %v67
    %v78 = vunpack.c.l.b16 %v49
    %v79 = vunpack.c.h.b16 %v49
    %v80 = vunpack.c.l.b16 %v50
    %v81 = vunpack.c.l.b16 %v51
    %v82 = vunpack.c.h.b16 %v51
    %v83 = vunpack.c.l.b16 %v52
    %v84 = vunpack.c.l.b16 %v53
    %v85 = vunpack.c.h.b16 %v53
    %v86 = vunpack.c.l.b16 %v54
    %v87 = vpack.c.b16 %v81, %v78
    %v88 = vpack.c.b16 %v82, %v79
    %v89 = vpack.c.b16 %v83, %v80
    %v90 = vpack.c.b16 %v84, %v84
    %v91 = vpack.c.b16 %v85, %v85
    %v92 = vpack.c.b16 %v86, %v86
    %vm96 = vcmask 162816
    %v98 = vsel %vm96, %v48, 0
    %vm100 = vcmask 1041408
    %v102 = vsel %vm100, %v90, 0
    %v105 = vsel %vm100, %v91, 0
    %v108 = vsel %vm100, %v92, 0
    %110 = vmatprep.subr.bf16.mxu0 %v88
    %111 = vmatpush1.bf16.msra.mxu0 %v87
    %112 = vmatprep.subr.bf16.mxu0 %v105
    %113 = vmatpush1.bf16.msra.mxu0 %v102
    %114 = vmatprep.subr.bf16.mxu0 0
    %115 = vmatpush1.bf16.msra.mxu0 0
    %116 = vmatprep.subr.bf16.mxu0 0
    %117 = vmatpush1.bf16.msra.mxu0 0
    %118 = vmatprep.subr.bf16.mxu0 0
    %119 = vmatpush1.bf16.msra.mxu0 0
    %120 = vmatprep.subr.bf16.mxu0 0
    %121 = vmatpush1.bf16.msra.mxu0 0
    %122 = vmatprep.subr.bf16.mxu0 0
    %123 = vmatpush1.bf16.msra.mxu0 0
    %124 = vmatprep.subr.bf16.mxu0 0
    %125 = vmatpush1.bf16.msra.mxu0 0
    %126 = vmatprep.subr.bf16.mxu0 0
    %127 = vmatpush1.bf16.msra.mxu0 0
    %128 = vmatprep.subr.bf16.mxu0 0
    %129 = vmatpush1.bf16.msra.mxu0 0
    %130 = vmatprep.subr.bf16.mxu0 0
    %131 = vmatpush1.bf16.msra.mxu0 0
    %132 = vmatprep.subr.bf16.mxu0 0
    %133 = vmatpush1.bf16.msra.mxu0 0
    %134 = vmatprep.subr.bf16.mxu0 0
    %135 = vmatpush1.bf16.msra.mxu0 0
    %136 = vmatprep.subr.bf16.mxu0 0
    %137 = vmatpush1.bf16.msra.mxu0 0
    %138 = vmatprep.subr.bf16.mxu0 0
    %139 = vmatpush1.bf16.msra.mxu0 0
    %140 = vmatprep.subr.bf16.mxu0 0
    %141 = vmatpush1.bf16.msra.mxu0 0
    %142 = vmatprep.mubr.bf16.mxu0 0
    %143 = vmatmul.mubr.bf16.gmra.mrb[0].mxu0 %v98
    %v144 = vpop.f32.mrb[0].mxu0
    %v145 = vadd.f32 %v60, %v144
    %v146 = vpop.f32.mrb[0].mxu0
    %v147 = vadd.f32 %v64, %v146
    %v148 = vpop.f32.mrb[0].mxu0
    %v149 = vpop.f32.mrb[0].mxu0
    %150 = vdwg.mxu0
    %151 = vmatprep.subr.bf16.mxu0 0
    %152 = vmatpush1.bf16.msra.mxu0 %v89
    %153 = vmatprep.subr.bf16.mxu0 0
    %154 = vmatpush1.bf16.msra.mxu0 %v108
    %155 = vmatprep.subr.bf16.mxu0 0
    %156 = vmatpush1.bf16.msra.mxu0 0
    %157 = vmatprep.subr.bf16.mxu0 0
    %158 = vmatpush1.bf16.msra.mxu0 0
    %159 = vmatprep.subr.bf16.mxu0 0
    %160 = vmatpush1.bf16.msra.mxu0 0
    %161 = vmatprep.subr.bf16.mxu0 0
    %162 = vmatpush1.bf16.msra.mxu0 0
    %163 = vmatprep.subr.bf16.mxu0 0
    %164 = vmatpush1.bf16.msra.mxu0 0
    %165 = vmatprep.subr.bf16.mxu0 0
    %166 = vmatpush1.bf16.msra.mxu0 0
    %167 = vmatprep.subr.bf16.mxu0 0
    %168 = vmatpush1.bf16.msra.mxu0 0
    %169 = vmatprep.subr.bf16.mxu0 0
    %170 = vmatpush1.bf16.msra.mxu0 0
    %171 = vmatprep.subr.bf16.mxu0 0
    %172 = vmatpush1.bf16.msra.mxu0 0
    %173 = vmatprep.subr.bf16.mxu0 0
    %174 = vmatpush1.bf16.msra.mxu0 0
    %175 = vmatprep.subr.bf16.mxu0 0
    %176 = vmatpush1.bf16.msra.mxu0 0
    %177 = vmatprep.subr.bf16.mxu0 0
    %178 = vmatpush1.bf16.msra.mxu0 0
    %179 = vmatprep.subr.bf16.mxu0 0
    %180 = vmatpush1.bf16.msra.mxu0 0
    %181 = vmatprep.subr.bf16.mxu0 0
    %182 = vmatpush1.bf16.msra.mxu0 0
    %183 = vmatprep.mubr.bf16.mxu0 0
    %184 = vmatmul.mubr.bf16.gmra.mrb[0].mxu0 %v98
    %v185 = vpop.f32.mrb[0].mxu0
    %v186 = vadd.f32 %v68, %v185
    %v187 = vpop.f32.mrb[0].mxu0
    %v188 = vpop.f32.mrb[0].mxu0
    %v189 = vpop.f32.mrb[0].mxu0
    %190 = vdwg.mxu0
    %v191 = vmax.f32 %v145, 0.0
    %v192 = vmax.f32 %v147, 0.0
    %v193 = vmax.f32 %v186, 0.0
    %v194 = vpack.c.bf16 %v191, %v191
    %v195 = vpack.c.bf16 %v192, %v192
    %v196 = vpack.c.bf16 %v193, %v193
    %v197 = vld [vmem:[#allocation2] sm:$0xff]
    %v198 = vld [vmem:[#allocation2 + $0x8] sm:$0xff]
    %v199 = vld [vmem:[#allocation2 + $0x10] sm:$0xf]
    %v200 = vld [vmem:[#allocation2 + $0x14] sm:$0xff]
    %v201 = vld [vmem:[#allocation2 + $0x1c] sm:$0xff]
    %v202 = vld [vmem:[#allocation2 + $0x24] sm:$0xf]
    %v203 = vld [vmem:[#allocation2 + $0x28] sm:$0xff]
    %v204 = vld [vmem:[#allocation2 + $0x30] sm:$0xff]
    %v205 = vld [vmem:[#allocation2 + $0x38] sm:$0xf]
    %v206 = vld [vmem:[#allocation2 + $0x3c] sm:$0xff]
    %v207 = vld [vmem:[#allocation2 + $0x44] sm:$0xff]
    %v208 = vld [vmem:[#allocation2 + $0x4c] sm:$0xf]
    %v209 = vld [vmem:[#allocation2 + $0x50] sm:$0xff]
    %v210 = vld [vmem:[#allocation2 + $0x58] sm:$0xff]
    %v211 = vld [vmem:[#allocation2 + $0x60] sm:$0xf]
    %v212 = vld [vmem:[#allocation2 + $0x64] sm:$0xff]
    %v213 = vld [vmem:[#allocation2 + $0x6c] sm:$0xff]
    %v214 = vld [vmem:[#allocation2 + $0x74] sm:$0xf]
    %v215 = vld [vmem:[#allocation2 + $0x78] sm:$0xff]
    %v216 = vld [vmem:[#allocation2 + $0x80] sm:$0xff]
    %v217 = vld [vmem:[#allocation2 + $0x88] sm:$0xf]
    %v218 = vld [vmem:[#allocation2 + $0x8c] sm:$0xff]
    %v219 = vld [vmem:[#allocation2 + $0x94] sm:$0xff]
    %v220 = vld [vmem:[#allocation2 + $0x9c] sm:$0xf]
    %v221 = vld [vmem:[#allocation2 + $0xa0] sm:$0xff]
    %v222 = vld [vmem:[#allocation2 + $0xa8] sm:$0xff]
    %v223 = vld [vmem:[#allocation2 + $0xb0] sm:$0xf]
    %v224 = vld [vmem:[#allocation2 + $0xb4] sm:$0xff]
    %v225 = vld [vmem:[#allocation2 + $0xbc] sm:$0xff]
    %v226 = vld [vmem:[#allocation2 + $0xc4] sm:$0xf]
    %v227 = vld [vmem:[#allocation2 + $0xc8] sm:$0xff]
    %v228 = vld [vmem:[#allocation2 + $0xd0] sm:$0xff]
    %v229 = vld [vmem:[#allocation2 + $0xd8] sm:$0xf]
    %v230 = vld [vmem:[#allocation2 + $0xdc] sm:$0xff]
    %v231 = vld [vmem:[#allocation2 + $0xe4] sm:$0xff]
    %v232 = vld [vmem:[#allocation2 + $0xec] sm:$0xf]
    %v233 = vld [vmem:[#allocation2 + $0xf0] sm:$0xff]
    %v234 = vld [vmem:[#allocation2 + $0xf8] sm:$0xff]
    %v235 = vld [vmem:[#allocation2 + $0x100] sm:$0xf]
    %v236 = vld [vmem:[#allocation2 + $0x104] sm:$0xff]
    %v237 = vld [vmem:[#allocation2 + $0x10c] sm:$0xff]
    %v238 = vld [vmem:[#allocation2 + $0x114] sm:$0xf]
    %v239 = vld [vmem:[#allocation2 + $0x118] sm:$0xff]
    %v240 = vld [vmem:[#allocation2 + $0x120] sm:$0xff]
    %v241 = vld [vmem:[#allocation2 + $0x128] sm:$0xf]
    %v242 = vld [vmem:[#allocation2 + $0x12c] sm:$0xff]
    %v243 = vld [vmem:[#allocation2 + $0x134] sm:$0xff]
    %v244 = vld [vmem:[#allocation2 + $0x13c] sm:$0xf]
    %v245 = vld [vmem:[#allocation2 + $0x140] sm:$0xff]
    %v246 = vld [vmem:[#allocation2 + $0x148] sm:$0xff]
    %v247 = vld [vmem:[#allocation2 + $0x150] sm:$0xf]
    %v248 = vld [vmem:[#allocation2 + $0x154] sm:$0xff]
    %v249 = vld [vmem:[#allocation2 + $0x15c] sm:$0xff]
    %v250 = vld [vmem:[#allocation2 + $0x164] sm:$0xf]
    %v251 = vld [vmem:[#allocation2 + $0x168] sm:$0xff]
    %v252 = vld [vmem:[#allocation2 + $0x170] sm:$0xff]
    %v253 = vld [vmem:[#allocation2 + $0x178] sm:$0xf]
    %v254 = vld [vmem:[#allocation2 + $0x17c] sm:$0xff]
    %v255 = vld [vmem:[#allocation2 + $0x184] sm:$0xff]
    %v256 = vld [vmem:[#allocation2 + $0x18c] sm:$0xf]
    %v257 = vld [vmem:[#allocation2 + $0x190] sm:$0xff]
    %v258 = vld [vmem:[#allocation2 + $0x198] sm:$0xff]
    %v259 = vld [vmem:[#allocation2 + $0x1a0] sm:$0xf]
    %v260 = vld [vmem:[#allocation2 + $0x1a4] sm:$0xff]
    %v261 = vld [vmem:[#allocation2 + $0x1ac] sm:$0xff]
    %v262 = vld [vmem:[#allocation2 + $0x1b4] sm:$0xf]
    %v263 = vld [vmem:[#allocation2 + $0x1b8] sm:$0xff]
    %v264 = vld [vmem:[#allocation2 + $0x1c0] sm:$0xff]
    %v265 = vld [vmem:[#allocation2 + $0x1c8] sm:$0xf]
    %v266 = vld [vmem:[#allocation2 + $0x1cc] sm:$0xff]
    %v267 = vld [vmem:[#allocation2 + $0x1d4] sm:$0xff]
    %v268 = vld [vmem:[#allocation2 + $0x1dc] sm:$0xf]
    %v269 = vld [vmem:[#allocation2 + $0x1e0] sm:$0xff]
    %v270 = vld [vmem:[#allocation2 + $0x1e8] sm:$0xff]
    %v271 = vld [vmem:[#allocation2 + $0x1f0] sm:$0xf]
    %v272 = vld [vmem:[#allocation2 + $0x1f4] sm:$0xff]
    %v273 = vld [vmem:[#allocation2 + $0x1fc] sm:$0xff]
    %v274 = vld [vmem:[#allocation2 + $0x204] sm:$0xf]
    %v275 = vld [vmem:[#allocation2 + $0x208] sm:$0xff]
    %v276 = vld [vmem:[#allocation2 + $0x210] sm:$0xff]
    %v277 = vld [vmem:[#allocation2 + $0x218] sm:$0xf]
    %v278 = vld [vmem:[#allocation2 + $0x21c] sm:$0xff]
    %v279 = vld [vmem:[#allocation2 + $0x224] sm:$0xff]
    %v280 = vld [vmem:[#allocation2 + $0x22c] sm:$0xf]
    %v281 = vld [vmem:[#allocation2 + $0x230] sm:$0xff]
    %v282 = vld [vmem:[#allocation2 + $0x238] sm:$0xff]
    %v283 = vld [vmem:[#allocation2 + $0x240] sm:$0xf]
    %v284 = vld [vmem:[#allocation2 + $0x244] sm:$0xff]
    %v285 = vld [vmem:[#allocation2 + $0x24c] sm:$0xff]
    %v286 = vld [vmem:[#allocation2 + $0x254] sm:$0xf]
    %v287 = vld [vmem:[#allocation2 + $0x258] sm:$0xff]
    %v288 = vld [vmem:[#allocation2 + $0x260] sm:$0xff]
    %v289 = vld [vmem:[#allocation2 + $0x268] sm:$0xf]
    %v290 = vld [vmem:[#allocation2 + $0x26c] sm:$0xff]
    %v291 = vld [vmem:[#allocation2 + $0x274] sm:$0xff]
    %v292 = vld [vmem:[#allocation2 + $0x27c] sm:$0xf]
    %v293 = vld [vmem:[#allocation2 + $0x280] sm:$0xff]
    %v294 = vld [vmem:[#allocation2 + $0x288] sm:$0xff]
    %v295 = vld [vmem:[#allocation2 + $0x290] sm:$0xf]
    %v296 = vld [vmem:[#allocation2 + $0x294] sm:$0xff]
    %v297 = vld [vmem:[#allocation2 + $0x29c] sm:$0xff]
    %v298 = vld [vmem:[#allocation2 + $0x2a4] sm:$0xf]
    %v299 = vld [vmem:[#allocation2 + $0x2a8] sm:$0xff]
    %v300 = vld [vmem:[#allocation2 + $0x2b0] sm:$0xff]
    %v301 = vld [vmem:[#allocation2 + $0x2b8] sm:$0xf]
    %v302 = vld [vmem:[#allocation2 + $0x2bc] sm:$0xff]
    %v303 = vld [vmem:[#allocation2 + $0x2c4] sm:$0xff]
    %v304 = vld [vmem:[#allocation2 + $0x2cc] sm:$0xf]
    %v305 = vld [vmem:[#allocation2 + $0x2d0] sm:$0xff]
    %v306 = vld [vmem:[#allocation2 + $0x2d8] sm:$0xff]
    %v307 = vld [vmem:[#allocation2 + $0x2e0] sm:$0xf]
    %v308 = vld [vmem:[#allocation2 + $0x2e4] sm:$0xff]
    %v309 = vld [vmem:[#allocation2 + $0x2ec] sm:$0xff]
    %v310 = vld [vmem:[#allocation2 + $0x2f4] sm:$0xf]
    %v311 = vld [vmem:[#allocation2 + $0x2f8] sm:$0xff]
    %v312 = vld [vmem:[#allocation2 + $0x300] sm:$0xff]
    %v313 = vld [vmem:[#allocation2 + $0x308] sm:$0xf]
    %v314 = vld [vmem:[#allocation2 + $0x30c] sm:$0xff]
    %v315 = vld [vmem:[#allocation2 + $0x314] sm:$0xff]
    %v316 = vld [vmem:[#allocation2 + $0x31c] sm:$0xf]
    %v317 = vld [vmem:[#allocation2 + $0x320] sm:$0xff]
    %v318 = vld [vmem:[#allocation2 + $0x328] sm:$0xff]
    %v319 = vld [vmem:[#allocation2 + $0x330] sm:$0xf]
    %v320 = vld [vmem:[#allocation2 + $0x334] sm:$0xff]
    %v321 = vld [vmem:[#allocation2 + $0x33c] sm:$0xff]
    %v322 = vld [vmem:[#allocation2 + $0x344] sm:$0xf]
    %v323 = vld [vmem:[#allocation2 + $0x348] sm:$0xff]
    %v324 = vld [vmem:[#allocation2 + $0x350] sm:$0xff]
    %v325 = vld [vmem:[#allocation2 + $0x358] sm:$0xf]
    %v326 = vld [vmem:[#allocation2 + $0x35c] sm:$0xff]
    %v327 = vld [vmem:[#allocation2 + $0x364] sm:$0xff]
    %v328 = vld [vmem:[#allocation2 + $0x36c] sm:$0xf]
    %v329 = vld [vmem:[%s4] sm:$0x1f]
    %v331 = vlaneseq
    %v332 = vshrl.u32 %v331, 7
    %v333 = vsub.s32 0, %v332
    %v334 = vrot.slane %v329, %v333
    %v335 = vlaneseq
    %v336 = vshrl.u32 %v335, 7
    %v337 = vsub.s32 1, %v336
    %v338 = vrot.slane %v329, %v337
    %v339 = vlaneseq
    %v340 = vshrl.u32 %v339, 7
    %v341 = vsub.s32 2, %v340
    %v342 = vrot.slane %v329, %v341
    %v343 = vlaneseq
    %v344 = vshrl.u32 %v343, 7
    %v345 = vsub.s32 3, %v344
    %v346 = vrot.slane %v329, %v345
    %v347 = vlaneseq
    %v348 = vshrl.u32 %v347, 7
    %v349 = vsub.s32 4, %v348
    %v350 = vrot.slane %v329, %v349
    %v488 = vunpack.c.l.b16 %v197
    %v489 = vunpack.c.h.b16 %v197
    %v490 = vunpack.c.l.b16 %v198
    %v491 = vunpack.c.h.b16 %v198
    %v492 = vunpack.c.l.b16 %v199
    %v493 = vunpack.c.l.b16 %v200
    %v494 = vunpack.c.h.b16 %v200
    %v495 = vunpack.c.l.b16 %v201
    %v496 = vunpack.c.h.b16 %v201
    %v497 = vunpack.c.l.b16 %v202
    %v498 = vunpack.c.l.b16 %v203
    %v499 = vunpack.c.h.b16 %v203
    %v500 = vunpack.c.l.b16 %v204
    %v501 = vunpack.c.h.b16 %v204
    %v502 = vunpack.c.l.b16 %v205
    %v503 = vunpack.c.l.b16 %v206
    %v504 = vunpack.c.h.b16 %v206
    %v505 = vunpack.c.l.b16 %v207
    %v506 = vunpack.c.h.b16 %v207
    %v507 = vunpack.c.l.b16 %v208
    %v508 = vunpack.c.l.b16 %v209
    %v509 = vunpack.c.h.b16 %v209
    %v510 = vunpack.c.l.b16 %v210
    %v511 = vunpack.c.h.b16 %v210
    %v512 = vunpack.c.l.b16 %v211
    %v513 = vunpack.c.l.b16 %v212
    %v514 = vunpack.c.h.b16 %v212
    %v515 = vunpack.c.l.b16 %v213
    %v516 = vunpack.c.h.b16 %v213
    %v517 = vunpack.c.l.b16 %v214
    %v518 = vunpack.c.l.b16 %v215
    %v519 = vunpack.c.h.b16 %v215
    %v520 = vunpack.c.l.b16 %v216
    %v521 = vunpack.c.h.b16 %v216
    %v522 = vunpack.c.l.b16 %v217
    %v523 = vunpack.c.l.b16 %v218
    %v524 = vunpack.c.h.b16 %v218
    %v525 = vunpack.c.l.b16 %v219
    %v526 = vunpack.c.h.b16 %v219
    %v527 = vunpack.c.l.b16 %v220
    %v528 = vunpack.c.l.b16 %v221
    %v529 = vunpack.c.h.b16 %v221
    %v530 = vunpack.c.l.b16 %v222
    %v531 = vunpack.c.h.b16 %v222
    %v532 = vunpack.c.l.b16 %v223
    %v533 = vunpack.c.l.b16 %v224
    %v534 = vunpack.c.h.b16 %v224
    %v535 = vunpack.c.l.b16 %v225
    %v536 = vunpack.c.h.b16 %v225
    %v537 = vunpack.c.l.b16 %v226
    %v538 = vunpack.c.l.b16 %v227
    %v539 = vunpack.c.h.b16 %v227
    %v540 = vunpack.c.l.b16 %v228
    %v541 = vunpack.c.h.b16 %v228
    %v542 = vunpack.c.l.b16 %v229
    %v543 = vunpack.c.l.b16 %v230
    %v544 = vunpack.c.h.b16 %v230
    %v545 = vunpack.c.l.b16 %v231
    %v546 = vunpack.c.h.b16 %v231
    %v547 = vunpack.c.l.b16 %v232
    %v548 = vunpack.c.l.b16 %v233
    %v549 = vunpack.c.h.b16 %v233
    %v550 = vunpack.c.l.b16 %v234
    %v551 = vunpack.c.h.b16 %v234
    %v552 = vunpack.c.l.b16 %v235
    %v553 = vunpack.c.l.b16 %v236
    %v554 = vunpack.c.h.b16 %v236
    %v555 = vunpack.c.l.b16 %v237
    %v556 = vunpack.c.h.b16 %v237
    %v557 = vunpack.c.l.b16 %v238
    %v558 = vunpack.c.l.b16 %v239
    %v559 = vunpack.c.h.b16 %v239
    %v560 = vunpack.c.l.b16 %v240
    %v561 = vunpack.c.h.b16 %v240
    %v562 = vunpack.c.l.b16 %v241
    %v563 = vunpack.c.l.b16 %v242
    %v564 = vunpack.c.h.b16 %v242
    %v565 = vunpack.c.l.b16 %v243
    %v566 = vunpack.c.h.b16 %v243
    %v567 = vunpack.c.l.b16 %v244
    %v568 = vunpack.c.l.b16 %v245
    %v569 = vunpack.c.h.b16 %v245
    %v570 = vunpack.c.l.b16 %v246
    %v571 = vunpack.c.h.b16 %v246
    %v572 = vunpack.c.l.b16 %v247
    %v573 = vunpack.c.l.b16 %v248
    %v574 = vunpack.c.h.b16 %v248
    %v575 = vunpack.c.l.b16 %v249
    %v576 = vunpack.c.h.b16 %v249
    %v577 = vunpack.c.l.b16 %v250
    %v578 = vunpack.c.l.b16 %v251
    %v579 = vunpack.c.h.b16 %v251
    %v580 = vunpack.c.l.b16 %v252
    %v581 = vunpack.c.h.b16 %v252
    %v582 = vunpack.c.l.b16 %v253
    %v583 = vunpack.c.l.b16 %v254
    %v584 = vunpack.c.h.b16 %v254
    %v585 = vunpack.c.l.b16 %v255
    %v586 = vunpack.c.h.b16 %v255
    %v587 = vunpack.c.l.b16 %v256
    %v588 = vunpack.c.l.b16 %v257
    %v589 = vunpack.c.h.b16 %v257
    %v590 = vunpack.c.l.b16 %v258
    %v591 = vunpack.c.h.b16 %v258
    %v592 = vunpack.c.l.b16 %v259
    %v593 = vunpack.c.l.b16 %v260
    %v594 = vunpack.c.h.b16 %v260
    %v595 = vunpack.c.l.b16 %v261
    %v596 = vunpack.c.h.b16 %v261
    %v597 = vunpack.c.l.b16 %v262
    %v598 = vunpack.c.l.b16 %v263
    %v599 = vunpack.c.h.b16 %v263
    %v600 = vunpack.c.l.b16 %v264
    %v601 = vunpack.c.h.b16 %v264
    %v602 = vunpack.c.l.b16 %v265
    %v603 = vunpack.c.l.b16 %v266
    %v604 = vunpack.c.h.b16 %v266
    %v605 = vunpack.c.l.b16 %v267
    %v606 = vunpack.c.h.b16 %v267
    %v607 = vunpack.c.l.b16 %v268
    %v608 = vunpack.c.l.b16 %v269
    %v609 = vunpack.c.h.b16 %v269
    %v610 = vunpack.c.l.b16 %v270
    %v611 = vunpack.c.h.b16 %v270
    %v612 = vunpack.c.l.b16 %v271
    %v613 = vunpack.c.l.b16 %v272
    %v614 = vunpack.c.h.b16 %v272
    %v615 = vunpack.c.l.b16 %v273
    %v616 = vunpack.c.h.b16 %v273
    %v617 = vunpack.c.l.b16 %v274
    %v618 = vunpack.c.l.b16 %v275
    %v619 = vunpack.c.h.b16 %v275
    %v620 = vunpack.c.l.b16 %v276
    %v621 = vunpack.c.h.b16 %v276
    %v622 = vunpack.c.l.b16 %v277
    %v623 = vunpack.c.l.b16 %v278
    %v624 = vunpack.c.h.b16 %v278
    %v625 = vunpack.c.l.b16 %v279
    %v626 = vunpack.c.h.b16 %v279
    %v627 = vunpack.c.l.b16 %v280
    %v628 = vunpack.c.l.b16 %v281
    %v629 = vunpack.c.h.b16 %v281
    %v630 = vunpack.c.l.b16 %v282
    %v631 = vunpack.c.h.b16 %v282
    %v632 = vunpack.c.l.b16 %v283
    %v633 = vunpack.c.l.b16 %v284
    %v634 = vunpack.c.h.b16 %v284
    %v635 = vunpack.c.l.b16 %v285
    %v636 = vunpack.c.h.b16 %v285
    %v637 = vunpack.c.l.b16 %v286
    %v638 = vunpack.c.l.b16 %v287
    %v639 = vunpack.c.h.b16 %v287
    %v640 = vunpack.c.l.b16 %v288
    %v641 = vunpack.c.h.b16 %v288
    %v642 = vunpack.c.l.b16 %v289
    %v643 = vunpack.c.l.b16 %v290
    %v644 = vunpack.c.h.b16 %v290
    %v645 = vunpack.c.l.b16 %v291
    %v646 = vunpack.c.h.b16 %v291
    %v647 = vunpack.c.l.b16 %v292
    %v648 = vunpack.c.l.b16 %v293
    %v649 = vunpack.c.h.b16 %v293
    %v650 = vunpack.c.l.b16 %v294
    %v651 = vunpack.c.h.b16 %v294
    %v652 = vunpack.c.l.b16 %v295
    %v653 = vunpack.c.l.b16 %v296
    %v654 = vunpack.c.h.b16 %v296
    %v655 = vunpack.c.l.b16 %v297
    %v656 = vunpack.c.h.b16 %v297
    %v657 = vunpack.c.l.b16 %v298
    %v658 = vunpack.c.l.b16 %v299
    %v659 = vunpack.c.h.b16 %v299
    %v660 = vunpack.c.l.b16 %v300
    %v661 = vunpack.c.h.b16 %v300
    %v662 = vunpack.c.l.b16 %v301
    %v663 = vunpack.c.l.b16 %v302
    %v664 = vunpack.c.h.b16 %v302
    %v665 = vunpack.c.l.b16 %v303
    %v666 = vunpack.c.h.b16 %v303
    %v667 = vunpack.c.l.b16 %v304
    %v668 = vunpack.c.l.b16 %v305
    %v669 = vunpack.c.h.b16 %v305
    %v670 = vunpack.c.l.b16 %v306
    %v671 = vunpack.c.h.b16 %v306
    %v672 = vunpack.c.l.b16 %v307
    %v673 = vunpack.c.l.b16 %v308
    %v674 = vunpack.c.h.b16 %v308
    %v675 = vunpack.c.l.b16 %v309
    %v676 = vunpack.c.h.b16 %v309
    %v677 = vunpack.c.l.b16 %v310
    %v678 = vunpack.c.l.b16 %v311
    %v679 = vunpack.c.h.b16 %v311
    %v680 = vunpack.c.l.b16 %v312
    %v681 = vunpack.c.h.b16 %v312
    %v682 = vunpack.c.l.b16 %v313
    %v683 = vunpack.c.l.b16 %v314
    %v684 = vunpack.c.h.b16 %v314
    %v685 = vunpack.c.l.b16 %v315
    %v686 = vunpack.c.h.b16 %v315
    %v687 = vunpack.c.l.b16 %v316
    %v688 = vunpack.c.l.b16 %v317
    %v689 = vunpack.c.h.b16 %v317
    %v690 = vunpack.c.l.b16 %v318
    %v691 = vunpack.c.h.b16 %v318
    %v692 = vunpack.c.l.b16 %v319
    %v693 = vunpack.c.l.b16 %v320
    %v694 = vunpack.c.h.b16 %v320
    %v695 = vunpack.c.l.b16 %v321
    %v696 = vunpack.c.h.b16 %v321
    %v697 = vunpack.c.l.b16 %v322
    %v698 = vunpack.c.l.b16 %v323
    %v699 = vunpack.c.h.b16 %v323
    %v700 = vunpack.c.l.b16 %v324
    %v701 = vunpack.c.h.b16 %v324
    %v702 = vunpack.c.l.b16 %v325
    %v703 = vunpack.c.l.b16 %v326
    %v704 = vunpack.c.h.b16 %v326
    %v705 = vunpack.c.l.b16 %v327
    %v706 = vunpack.c.h.b16 %v327
    %v707 = vunpack.c.l.b16 %v328
    %v708 = vpack.c.b16 %v493, %v488
    %v709 = vpack.c.b16 %v494, %v489
    %v710 = vpack.c.b16 %v495, %v490
    %v711 = vpack.c.b16 %v496, %v491
    %v712 = vpack.c.b16 %v497, %v492
    %v713 = vpack.c.b16 %v503, %v498
    %v714 = vpack.c.b16 %v504, %v499
    %v715 = vpack.c.b16 %v505, %v500
    %v716 = vpack.c.b16 %v506, %v501
    %v717 = vpack.c.b16 %v507, %v502
    %v718 = vpack.c.b16 %v513, %v508
    %v719 = vpack.c.b16 %v514, %v509
    %v720 = vpack.c.b16 %v515, %v510
    %v721 = vpack.c.b16 %v516, %v511
    %v722 = vpack.c.b16 %v517, %v512
    %v723 = vpack.c.b16 %v523, %v518
    %v724 = vpack.c.b16 %v524, %v519
    %v725 = vpack.c.b16 %v525, %v520
    %v726 = vpack.c.b16 %v526, %v521
    %v727 = vpack.c.b16 %v527, %v522
    %v728 = vpack.c.b16 %v533, %v528
    %v729 = vpack.c.b16 %v534, %v529
    %v730 = vpack.c.b16 %v535, %v530
    %v731 = vpack.c.b16 %v536, %v531
    %v732 = vpack.c.b16 %v537, %v532
    %v733 = vpack.c.b16 %v543, %v538
    %v734 = vpack.c.b16 %v544, %v539
    %v735 = vpack.c.b16 %v545, %v540
    %v736 = vpack.c.b16 %v546, %v541
    %v737 = vpack.c.b16 %v547, %v542
    %v738 = vpack.c.b16 %v553, %v548
    %v739 = vpack.c.b16 %v554, %v549
    %v740 = vpack.c.b16 %v555, %v550
    %v741 = vpack.c.b16 %v556, %v551
    %v742 = vpack.c.b16 %v557, %v552
    %v743 = vpack.c.b16 %v563, %v558
    %v744 = vpack.c.b16 %v564, %v559
    %v745 = vpack.c.b16 %v565, %v560
    %v746 = vpack.c.b16 %v566, %v561
    %v747 = vpack.c.b16 %v567, %v562
    %v748 = vpack.c.b16 %v573, %v568
    %v749 = vpack.c.b16 %v574, %v569
    %v750 = vpack.c.b16 %v575, %v570
    %v751 = vpack.c.b16 %v576, %v571
    %v752 = vpack.c.b16 %v577, %v572
    %v753 = vpack.c.b16 %v583, %v578
    %v754 = vpack.c.b16 %v584, %v579
    %v755 = vpack.c.b16 %v585, %v580
    %v756 = vpack.c.b16 %v586, %v581
    %v757 = vpack.c.b16 %v587, %v582
    %v758 = vpack.c.b16 %v593, %v588
    %v759 = vpack.c.b16 %v594, %v589
    %v760 = vpack.c.b16 %v595, %v590
    %v761 = vpack.c.b16 %v596, %v591
    %v762 = vpack.c.b16 %v597, %v592
    %v763 = vpack.c.b16 %v603, %v598
    %v764 = vpack.c.b16 %v604, %v599
    %v765 = vpack.c.b16 %v605, %v600
    %v766 = vpack.c.b16 %v606, %v601
    %v767 = vpack.c.b16 %v607, %v602
    %v768 = vpack.c.b16 %v613, %v608
    %v769 = vpack.c.b16 %v614, %v609
    %v770 = vpack.c.b16 %v615, %v610
    %v771 = vpack.c.b16 %v616, %v611
    %v772 = vpack.c.b16 %v617, %v612
    %v773 = vpack.c.b16 %v623, %v618
    %v774 = vpack.c.b16 %v624, %v619
    %v775 = vpack.c.b16 %v625, %v620
    %v776 = vpack.c.b16 %v626, %v621
    %v777 = vpack.c.b16 %v627, %v622
    %v778 = vpack.c.b16 %v633, %v628
    %v779 = vpack.c.b16 %v634, %v629
    %v780 = vpack.c.b16 %v635, %v630
    %v781 = vpack.c.b16 %v636, %v631
    %v782 = vpack.c.b16 %v637, %v632
    %v783 = vpack.c.b16 %v643, %v638
    %v784 = vpack.c.b16 %v644, %v639
    %v785 = vpack.c.b16 %v645, %v640
    %v786 = vpack.c.b16 %v646, %v641
    %v787 = vpack.c.b16 %v647, %v642
    %v788 = vpack.c.b16 %v653, %v648
    %v789 = vpack.c.b16 %v654, %v649
    %v790 = vpack.c.b16 %v655, %v650
    %v791 = vpack.c.b16 %v656, %v651
    %v792 = vpack.c.b16 %v657, %v652
    %v793 = vpack.c.b16 %v663, %v658
    %v794 = vpack.c.b16 %v664, %v659
    %v795 = vpack.c.b16 %v665, %v660
    %v796 = vpack.c.b16 %v666, %v661
    %v797 = vpack.c.b16 %v667, %v662
    %v798 = vpack.c.b16 %v673, %v668
    %v799 = vpack.c.b16 %v674, %v669
    %v800 = vpack.c.b16 %v675, %v670
    %v801 = vpack.c.b16 %v676, %v671
    %v802 = vpack.c.b16 %v677, %v672
    %v803 = vpack.c.b16 %v683, %v678
    %v804 = vpack.c.b16 %v684, %v679
    %v805 = vpack.c.b16 %v685, %v680
    %v806 = vpack.c.b16 %v686, %v681
    %v807 = vpack.c.b16 %v687, %v682
    %v808 = vpack.c.b16 %v693, %v688
    %v809 = vpack.c.b16 %v694, %v689
    %v810 = vpack.c.b16 %v695, %v690
    %v811 = vpack.c.b16 %v696, %v691
    %v812 = vpack.c.b16 %v697, %v692
    %v813 = vpack.c.b16 %v703, %v698
    %v814 = vpack.c.b16 %v704, %v699
    %v815 = vpack.c.b16 %v705, %v700
    %v816 = vpack.c.b16 %v706, %v701
    %v817 = vpack.c.b16 %v707, %v702
    %vm928 = vcmask 785408
    %v930 = vsel %vm928, %v196, 0
    %932 = vmatprep.subr.bf16.mxu0 %v709
    %933 = vmatpush1.bf16.msra.mxu0 %v708
    %934 = vmatprep.subr.bf16.mxu0 %v714
    %935 = vmatpush1.bf16.msra.mxu0 %v713
    %936 = vmatprep.subr.bf16.mxu0 %v719
    %937 = vmatpush1.bf16.msra.mxu0 %v718
    %938 = vmatprep.subr.bf16.mxu0 %v724
    %939 = vmatpush1.bf16.msra.mxu0 %v723
    %940 = vmatprep.subr.bf16.mxu0 %v729
    %941 = vmatpush1.bf16.msra.mxu0 %v728
    %942 = vmatprep.subr.bf16.mxu0 %v734
    %943 = vmatpush1.bf16.msra.mxu0 %v733
    %944 = vmatprep.subr.bf16.mxu0 %v739
    %945 = vmatpush1.bf16.msra.mxu0 %v738
    %946 = vmatprep.subr.bf16.mxu0 %v744
    %947 = vmatpush1.bf16.msra.mxu0 %v743
    %948 = vmatprep.subr.bf16.mxu0 %v749
    %949 = vmatpush1.bf16.msra.mxu0 %v748
    %950 = vmatprep.subr.bf16.mxu0 %v754
    %951 = vmatpush1.bf16.msra.mxu0 %v753
    %952 = vmatprep.subr.bf16.mxu0 %v759
    %953 = vmatpush1.bf16.msra.mxu0 %v758
    %954 = vmatprep.subr.bf16.mxu0 %v764
    %955 = vmatpush1.bf16.msra.mxu0 %v763
    %956 = vmatprep.subr.bf16.mxu0 %v769
    %957 = vmatpush1.bf16.msra.mxu0 %v768
    %958 = vmatprep.subr.bf16.mxu0 %v774
    %959 = vmatpush1.bf16.msra.mxu0 %v773
    %960 = vmatprep.subr.bf16.mxu0 %v779
    %961 = vmatpush1.bf16.msra.mxu0 %v778
    %962 = vmatprep.subr.bf16.mxu0 %v784
    %963 = vmatpush1.bf16.msra.mxu0 %v783
    %964 = vmatprep.mubr.bf16.mxu0 %v195
    %965 = vmatmul.mubr.bf16.gmra.mrb[0].mxu0 %v194
    %v966 = vpop.f32.mrb[0].mxu0
    %v967 = vadd.f32 %v334, %v966
    %v968 = vpop.f32.mrb[0].mxu0
    %v969 = vadd.f32 %v338, %v968
    %v970 = vpop.f32.mrb[0].mxu0
    %v971 = vpop.f32.mrb[0].mxu0
    %972 = vdwg.mxu0
    %973 = vmatprep.subr.bf16.mxu0 %v789
    %974 = vmatpush1.bf16.msra.mxu0 %v788
    %975 = vmatprep.subr.bf16.mxu0 %v794
    %976 = vmatpush1.bf16.msra.mxu0 %v793
    %977 = vmatprep.subr.bf16.mxu0 %v799
    %978 = vmatpush1.bf16.msra.mxu0 %v798
    %979 = vmatprep.subr.bf16.mxu0 %v804
    %980 = vmatpush1.bf16.msra.mxu0 %v803
    %981 = vmatprep.subr.bf16.mxu0 %v809
    %982 = vmatpush1.bf16.msra.mxu0 %v808
    %983 = vmatprep.subr.bf16.mxu0 %v814
    %984 = vmatpush1.bf16.msra.mxu0 %v813
    %985 = vmatprep.subr.bf16.mxu0 0
    %986 = vmatpush1.bf16.msra.mxu0 0
    %987 = vmatprep.subr.bf16.mxu0 0
    %988 = vmatpush1.bf16.msra.mxu0 0
    %989 = vmatprep.subr.bf16.mxu0 0
    %990 = vmatpush1.bf16.msra.mxu0 0
    %991 = vmatprep.subr.bf16.mxu0 0
    %992 = vmatpush1.bf16.msra.mxu0 0
    %993 = vmatprep.subr.bf16.mxu0 0
    %994 = vmatpush1.bf16.msra.mxu0 0
    %995 = vmatprep.subr.bf16.mxu0 0
    %996 = vmatpush1.bf16.msra.mxu0 0
    %997 = vmatprep.subr.bf16.mxu0 0
    %998 = vmatpush1.bf16.msra.mxu0 0
    %999 = vmatprep.subr.bf16.mxu0 0
    %1000 = vmatpush1.bf16.msra.mxu0 0
    %1001 = vmatprep.subr.bf16.mxu0 0
    %1002 = vmatpush1.bf16.msra.mxu0 0
    %1003 = vmatprep.subr.bf16.mxu0 0
    %1004 = vmatpush1.bf16.msra.mxu0 0
    %1005 = vmatprep.mubr.bf16.mxu0 0
    %1006 = vmatmul.mubr.bf16.gmra.mrb[0].mxu0 %v930
    %v1007 = vpop.f32.mrb[0].mxu0
    %v1008 = vadd.f32 %v967, %v1007
    %v1009 = vpop.f32.mrb[0].mxu0
    %v1010 = vadd.f32 %v969, %v1009
    %v1011 = vpop.f32.mrb[0].mxu0
    %v1012 = vpop.f32.mrb[0].mxu0
    %1013 = vdwg.mxu0
    %1014 = vmatprep.subr.bf16.mxu0 %v711
    %1015 = vmatpush1.bf16.msra.mxu0 %v710
    %1016 = vmatprep.subr.bf16.mxu0 %v716
    %1017 = vmatpush1.bf16.msra.mxu0 %v715
    %1018 = vmatprep.subr.bf16.mxu0 %v721
    %1019 = vmatpush1.bf16.msra.mxu0 %v720
    %1020 = vmatprep.subr.bf16.mxu0 %v726
    %1021 = vmatpush1.bf16.msra.mxu0 %v725
    %1022 = vmatprep.subr.bf16.mxu0 %v731
    %1023 = vmatpush1.bf16.msra.mxu0 %v730
    %1024 = vmatprep.subr.bf16.mxu0 %v736
    %1025 = vmatpush1.bf16.msra.mxu0 %v735
    %1026 = vmatprep.subr.bf16.mxu0 %v741
    %1027 = vmatpush1.bf16.msra.mxu0 %v740
    %1028 = vmatprep.subr.bf16.mxu0 %v746
    %1029 = vmatpush1.bf16.msra.mxu0 %v745
    %1030 = vmatprep.subr.bf16.mxu0 %v751
    %1031 = vmatpush1.bf16.msra.mxu0 %v750
    %1032 = vmatprep.subr.bf16.mxu0 %v756
    %1033 = vmatpush1.bf16.msra.mxu0 %v755
    %1034 = vmatprep.subr.bf16.mxu0 %v761
    %1035 = vmatpush1.bf16.msra.mxu0 %v760
    %1036 = vmatprep.subr.bf16.mxu0 %v766
    %1037 = vmatpush1.bf16.msra.mxu0 %v765
    %1038 = vmatprep.subr.bf16.mxu0 %v771
    %1039 = vmatpush1.bf16.msra.mxu0 %v770
    %1040 = vmatprep.subr.bf16.mxu0 %v776
    %1041 = vmatpush1.bf16.msra.mxu0 %v775
    %1042 = vmatprep.subr.bf16.mxu0 %v781
    %1043 = vmatpush1.bf16.msra.mxu0 %v780
    %1044 = vmatprep.subr.bf16.mxu0 %v786
    %1045 = vmatpush1.bf16.msra.mxu0 %v785
    %1046 = vmatprep.mubr.bf16.mxu0 %v195
    %1047 = vmatmul.mubr.bf16.gmra.mrb[0].mxu0 %v194
    %v1048 = vpop.f32.mrb[0].mxu0
    %v1049 = vadd.f32 %v342, %v1048
    %v1050 = vpop.f32.mrb[0].mxu0
    %v1051 = vadd.f32 %v346, %v1050
    %v1052 = vpop.f32.mrb[0].mxu0
    %v1053 = vpop.f32.mrb[0].mxu0
    %1054 = vdwg.mxu0
    %1055 = vmatprep.subr.bf16.mxu0 %v791
    %1056 = vmatpush1.bf16.msra.mxu0 %v790
    %1057 = vmatprep.subr.bf16.mxu0 %v796
    %1058 = vmatpush1.bf16.msra.mxu0 %v795
    %1059 = vmatprep.subr.bf16.mxu0 %v801
    %1060 = vmatpush1.bf16.msra.mxu0 %v800
    %1061 = vmatprep.subr.bf16.mxu0 %v806
    %1062 = vmatpush1.bf16.msra.mxu0 %v805
    %1063 = vmatprep.subr.bf16.mxu0 %v811
    %1064 = vmatpush1.bf16.msra.mxu0 %v810
    %1065 = vmatprep.subr.bf16.mxu0 %v816
    %1066 = vmatpush1.bf16.msra.mxu0 %v815
    %1067 = vmatprep.subr.bf16.mxu0 0
    %1068 = vmatpush1.bf16.msra.mxu0 0
    %1069 = vmatprep.subr.bf16.mxu0 0
    %1070 = vmatpush1.bf16.msra.mxu0 0
    %1071 = vmatprep.subr.bf16.mxu0 0
    %1072 = vmatpush1.bf16.msra.mxu0 0
    %1073 = vmatprep.subr.bf16.mxu0 0
    %1074 = vmatpush1.bf16.msra.mxu0 0
    %1075 = vmatprep.subr.bf16.mxu0 0
    %1076 = vmatpush1.bf16.msra.mxu0 0
    %1077 = vmatprep.subr.bf16.mxu0 0
    %1078 = vmatpush1.bf16.msra.mxu0 0
    %1079 = vmatprep.subr.bf16.mxu0 0
    %1080 = vmatpush1.bf16.msra.mxu0 0
    %1081 = vmatprep.subr.bf16.mxu0 0
    %1082 = vmatpush1.bf16.msra.mxu0 0
    %1083 = vmatprep.subr.bf16.mxu0 0
    %1084 = vmatpush1.bf16.msra.mxu0 0
    %1085 = vmatprep.subr.bf16.mxu0 0
    %1086 = vmatpush1.bf16.msra.mxu0 0
    %1087 = vmatprep.mubr.bf16.mxu0 0
    %1088 = vmatmul.mubr.bf16.gmra.mrb[0].mxu0 %v930
    %v1089 = vpop.f32.mrb[0].mxu0
    %v1090 = vadd.f32 %v1049, %v1089
    %v1091 = vpop.f32.mrb[0].mxu0
    %v1092 = vadd.f32 %v1051, %v1091
    %v1093 = vpop.f32.mrb[0].mxu0
    %v1094 = vpop.f32.mrb[0].mxu0
    %1095 = vdwg.mxu0
    %1096 = vmatprep.subr.bf16.mxu0 0
    %1097 = vmatpush1.bf16.msra.mxu0 %v712
    %1098 = vmatprep.subr.bf16.mxu0 0
    %1099 = vmatpush1.bf16.msra.mxu0 %v717
    %1100 = vmatprep.subr.bf16.mxu0 0
    %1101 = vmatpush1.bf16.msra.mxu0 %v722
    %1102 = vmatprep.subr.bf16.mxu0 0
    %1103 = vmatpush1.bf16.msra.mxu0 %v727
    %1104 = vmatprep.subr.bf16.mxu0 0
    %1105 = vmatpush1.bf16.msra.mxu0 %v732
    %1106 = vmatprep.subr.bf16.mxu0 0
    %1107 = vmatpush1.bf16.msra.mxu0 %v737
    %1108 = vmatprep.subr.bf16.mxu0 0
    %1109 = vmatpush1.bf16.msra.mxu0 %v742
    %1110 = vmatprep.subr.bf16.mxu0 0
    %1111 = vmatpush1.bf16.msra.mxu0 %v747
    %1112 = vmatprep.subr.bf16.mxu0 0
    %1113 = vmatpush1.bf16.msra.mxu0 %v752
    %1114 = vmatprep.subr.bf16.mxu0 0
    %1115 = vmatpush1.bf16.msra.mxu0 %v757
    %1116 = vmatprep.subr.bf16.mxu0 0
    %1117 = vmatpush1.bf16.msra.mxu0 %v762
    %1118 = vmatprep.subr.bf16.mxu0 0
    %1119 = vmatpush1.bf16.msra.mxu0 %v767
    %1120 = vmatprep.subr.bf16.mxu0 0
    %1121 = vmatpush1.bf16.msra.mxu0 %v772
    %1122 = vmatprep.subr.bf16.mxu0 0
    %1123 = vmatpush1.bf16.msra.mxu0 %v777
    %1124 = vmatprep.subr.bf16.mxu0 0
    %1125 = vmatpush1.bf16.msra.mxu0 %v782
    %1126 = vmatprep.subr.bf16.mxu0 0
    %1127 = vmatpush1.bf16.msra.mxu0 %v787
    %1128 = vmatprep.mubr.bf16.mxu0 %v195
    %1129 = vmatmul.mubr.bf16.gmra.mrb[0].mxu0 %v194
    %v1130 = vpop.f32.mrb[0].mxu0
    %v1131 = vadd.f32 %v350, %v1130
    %v1132 = vpop.f32.mrb[0].mxu0
    %v1133 = vpop.f32.mrb[0].mxu0
    %v1134 = vpop.f32.mrb[0].mxu0
    %1135 = vdwg.mxu0
    %1136 = vmatprep.subr.bf16.mxu0 0
    %1137 = vmatpush1.bf16.msra.mxu0 %v792
    %1138 = vmatprep.subr.bf16.mxu0 0
    %1139 = vmatpush1.bf16.msra.mxu0 %v797
    %1140 = vmatprep.subr.bf16.mxu0 0
    %1141 = vmatpush1.bf16.msra.mxu0 %v802
    %1142 = vmatprep.subr.bf16.mxu0 0
    %1143 = vmatpush1.bf16.msra.mxu0 %v807
    %1144 = vmatprep.subr.bf16.mxu0 0
    %1145 = vmatpush1.bf16.msra.mxu0 %v812
    %1146 = vmatprep.subr.bf16.mxu0 0
    %1147 = vmatpush1.bf16.msra.mxu0 %v817
    %1148 = vmatprep.subr.bf16.mxu0 0
    %1149 = vmatpush1.bf16.msra.mxu0 0
    %1150 = vmatprep.subr.bf16.mxu0 0
    %1151 = vmatpush1.bf16.msra.mxu0 0
    %1152 = vmatprep.subr.bf16.mxu0 0
    %1153 = vmatpush1.bf16.msra.mxu0 0
    %1154 = vmatprep.subr.bf16.mxu0 0
    %1155 = vmatpush1.bf16.msra.mxu0 0
    %1156 = vmatprep.subr.bf16.mxu0 0
    %1157 = vmatpush1.bf16.msra.mxu0 0
    %1158 = vmatprep.subr.bf16.mxu0 0
    %1159 = vmatpush1.bf16.msra.mxu0 0
    %1160 = vmatprep.subr.bf16.mxu0 0
    %1161 = vmatpush1.bf16.msra.mxu0 0
    %1162 = vmatprep.subr.bf16.mxu0 0
    %1163 = vmatpush1.bf16.msra.mxu0 0
    %1164 = vmatprep.subr.bf16.mxu0 0
    %1165 = vmatpush1.bf16.msra.mxu0 0
    %1166 = vmatprep.subr.bf16.mxu0 0
    %1167 = vmatpush1.bf16.msra.mxu0 0
    %1168 = vmatprep.mubr.bf16.mxu0 0
    %1169 = vmatmul.mubr.bf16.gmra.mrb[0].mxu0 %v930
    %v1170 = vpop.f32.mrb[0].mxu0
    %v1171 = vadd.f32 %v1131, %v1170
    %v1172 = vpop.f32.mrb[0].mxu0
    %v1173 = vpop.f32.mrb[0].mxu0
    %v1174 = vpop.f32.mrb[0].mxu0
    %1175 = vdwg.mxu0
    %v1176 = vmax.f32 %v1008, 0.0
    %v1177 = vmax.f32 %v1010, 0.0
    %v1178 = vmax.f32 %v1090, 0.0
    %v1179 = vmax.f32 %v1092, 0.0
    %v1180 = vmax.f32 %v1171, 0.0
    %v1181 = vpack.c.bf16 %v1176, %v1176
    %v1182 = vpack.c.bf16 %v1177, %v1177
    %v1183 = vpack.c.bf16 %v1178, %v1178
    %v1184 = vpack.c.bf16 %v1179, %v1179
    %v1185 = vpack.c.bf16 %v1180, %v1180
    %v1186 = vld [vmem:[%s5] sm:$0xf]
    %v1187 = vld [vmem:[%s5 + $0x4] sm:$0xf]
    %v1188 = vld [vmem:[%s5 + $0x8] sm:$0xf]
    %v1189 = vld [vmem:[%s5 + $0xc] sm:$0xf]
    %v1190 = vld [vmem:[%s5 + $0x10] sm:$0xf]
    %v1191 = vld [vmem:[%s5 + $0x14] sm:$0xf]
    %v1192 = vld [vmem:[%s5 + $0x18] sm:$0xf]
    %v1193 = vld [vmem:[%s5 + $0x1c] sm:$0xf]
    %v1194 = vld [vmem:[%s5 + $0x20] sm:$0xf]
    %v1195 = vld [vmem:[%s5 + $0x24] sm:$0xf]
    %v1196 = vld [vmem:[%s5 + $0x28] sm:$0xf]
    %v1197 = vld [vmem:[%s5 + $0x2c] sm:$0xf]
    %v1198 = vld [vmem:[%s5 + $0x30] sm:$0xf]
    %v1199 = vld [vmem:[%s5 + $0x34] sm:$0xf]
    %v1200 = vld [vmem:[%s5 + $0x38] sm:$0xf]
    %v1201 = vld [vmem:[%s5 + $0x3c] sm:$0xf]
    %v1202 = vld [vmem:[%s5 + $0x40] sm:$0xf]
    %v1203 = vld [vmem:[%s5 + $0x44] sm:$0xf]
    %v1204 = vld [vmem:[%s5 + $0x48] sm:$0xf]
    %v1205 = vld [vmem:[%s5 + $0x4c] sm:$0xf]
    %v1206 = vld [vmem:[%s5 + $0x50] sm:$0xf]
    %v1207 = vld [vmem:[%s5 + $0x54] sm:$0xf]
    %v1208 = vld [vmem:[%s5 + $0x58] sm:$0xf]
    %v1209 = vld [vmem:[%s5 + $0x5c] sm:$0xf]
    %v1210 = vld [vmem:[%s5 + $0x60] sm:$0xf]
    %v1211 = vld [vmem:[%s5 + $0x64] sm:$0xf]
    %v1212 = vld [vmem:[%s5 + $0x68] sm:$0xf]
    %v1213 = vld [vmem:[%s5 + $0x6c] sm:$0xf]
    %v1214 = vld [vmem:[%s5 + $0x70] sm:$0xf]
    %v1215 = vld [vmem:[%s5 + $0x74] sm:$0xf]
    %v1216 = vld [vmem:[%s5 + $0x78] sm:$0xf]
    %v1217 = vld [vmem:[%s5 + $0x7c] sm:$0xf]
    %v1218 = vld [vmem:[%s5 + $0x80] sm:$0xf]
    %v1219 = vld [vmem:[%s5 + $0x84] sm:$0xf]
    %v1220 = vld [vmem:[%s5 + $0x88] sm:$0xf]
    %v1221 = vld [vmem:[%s5 + $0x8c] sm:$0xf]
    %v1222 = vld [vmem:[%s5 + $0x90] sm:$0xf]
    %v1223 = vld [vmem:[%s5 + $0x94] sm:$0xf]
    %v1224 = vld [vmem:[%s5 + $0x98] sm:$0xf]
    %v1225 = vld [vmem:[%s5 + $0x9c] sm:$0xf]
    %v1226 = vld [vmem:[%s5 + $0xa0] sm:$0xf]
    %v1227 = vld [vmem:[%s5 + $0xa4] sm:$0xf]
    %v1228 = vld [vmem:[%s5 + $0xa8] sm:$0xf]
    %v1229 = vld [vmem:[%s5 + $0xac] sm:$0xf]
    %v1230 = vld [vmem:[%s5 + $0xb0] sm:$0xf]
    %v1231 = vld [vmem:[%s5 + $0xb4] sm:$0xf]
    %v1232 = vld [vmem:[%s5 + $0xb8] sm:$0xf]
    %v1233 = vld [vmem:[%s5 + $0xbc] sm:$0xf]
    %v1234 = vld [vmem:[%s5 + $0xc0] sm:$0xf]
    %v1235 = vld [vmem:[%s5 + $0xc4] sm:$0xf]
    %v1236 = vld [vmem:[%s5 + $0xc8] sm:$0xf]
    %v1237 = vld [vmem:[%s5 + $0xcc] sm:$0xf]
    %v1238 = vld [vmem:[%s5 + $0xd0] sm:$0xf]
    %v1239 = vld [vmem:[%s5 + $0xd4] sm:$0xf]
    %v1240 = vld [vmem:[%s5 + $0xd8] sm:$0xf]
    %v1241 = vld [vmem:[%s5 + $0xdc] sm:$0xf]
    %v1242 = vld [vmem:[%s5 + $0xe0] sm:$0xf]
    %v1243 = vld [vmem:[%s5 + $0xe4] sm:$0xf]
    %v1244 = vld [vmem:[%s5 + $0xe8] sm:$0xf]
    %v1245 = vld [vmem:[%s5 + $0xec] sm:$0xf]
    %v1246 = vld [vmem:[%s5 + $0xf0] sm:$0xf]
    %v1247 = vld [vmem:[%s5 + $0xf4] sm:$0xf]
    %v1248 = vld [vmem:[%s5 + $0xf8] sm:$0xf]
    %v1249 = vld [vmem:[%s5 + $0xfc] sm:$0xf]
    %v1250 = vld [vmem:[%s5 + $0x100] sm:$0xf]
    %v1251 = vld [vmem:[%s5 + $0x104] sm:$0xf]
    %v1252 = vld [vmem:[%s5 + $0x108] sm:$0xf]
    %v1253 = vld [vmem:[%s5 + $0x10c] sm:$0xf]
    %v1254 = vld [vmem:[%s5 + $0x110] sm:$0xf]
    %v1255 = vld [vmem:[%s5 + $0x114] sm:$0xf]
    %v1256 = vld [vmem:[%s5 + $0x118] sm:$0xf]
    %v1257 = vld [vmem:[%s5 + $0x11c] sm:$0xf]
    %v1258 = vld [vmem:[%s5 + $0x120] sm:$0xf]
    %v1259 = vld [vmem:[%s5 + $0x124] sm:$0xf]
    %v1260 = vld [vmem:[%s5 + $0x128] sm:$0xf]
    %v1261 = vld [vmem:[%s5 + $0x12c] sm:$0xf]
    %v1262 = vld [vmem:[%s5 + $0x130] sm:$0xf]
    %v1263 = vld [vmem:[%s5 + $0x134] sm:$0xf]
    %v1264 = vld [vmem:[%s5 + $0x138] sm:$0xf]
    %v1265 = vld [vmem:[%s5 + $0x13c] sm:$0xf]
    %v1266 = vld [vmem:[%s6] sm:$0x1]
    %v1268 = vlaneseq
    %v1269 = vshrl.u32 %v1268, 7
    %v1270 = vsub.s32 0, %v1269
    %v1271 = vrot.slane %v1266, %v1270
    %v1353 = vunpack.c.l.b16 %v1186
    %v1354 = vunpack.c.l.b16 %v1187
    %v1355 = vunpack.c.l.b16 %v1188
    %v1356 = vunpack.c.l.b16 %v1189
    %v1357 = vunpack.c.l.b16 %v1190
    %v1358 = vunpack.c.l.b16 %v1191
    %v1359 = vunpack.c.l.b16 %v1192
    %v1360 = vunpack.c.l.b16 %v1193
    %v1361 = vunpack.c.l.b16 %v1194
    %v1362 = vunpack.c.l.b16 %v1195
    %v1363 = vunpack.c.l.b16 %v1196
    %v1364 = vunpack.c.l.b16 %v1197
    %v1365 = vunpack.c.l.b16 %v1198
    %v1366 = vunpack.c.l.b16 %v1199
    %v1367 = vunpack.c.l.b16 %v1200
    %v1368 = vunpack.c.l.b16 %v1201
    %v1369 = vunpack.c.l.b16 %v1202
    %v1370 = vunpack.c.l.b16 %v1203
    %v1371 = vunpack.c.l.b16 %v1204
    %v1372 = vunpack.c.l.b16 %v1205
    %v1373 = vunpack.c.l.b16 %v1206
    %v1374 = vunpack.c.l.b16 %v1207
    %v1375 = vunpack.c.l.b16 %v1208
    %v1376 = vunpack.c.l.b16 %v1209
    %v1377 = vunpack.c.l.b16 %v1210
    %v1378 = vunpack.c.l.b16 %v1211
    %v1379 = vunpack.c.l.b16 %v1212
    %v1380 = vunpack.c.l.b16 %v1213
    %v1381 = vunpack.c.l.b16 %v1214
    %v1382 = vunpack.c.l.b16 %v1215
    %v1383 = vunpack.c.l.b16 %v1216
    %v1384 = vunpack.c.l.b16 %v1217
    %v1385 = vunpack.c.l.b16 %v1218
    %v1386 = vunpack.c.l.b16 %v1219
    %v1387 = vunpack.c.l.b16 %v1220
    %v1388 = vunpack.c.l.b16 %v1221
    %v1389 = vunpack.c.l.b16 %v1222
    %v1390 = vunpack.c.l.b16 %v1223
    %v1391 = vunpack.c.l.b16 %v1224
    %v1392 = vunpack.c.l.b16 %v1225
    %v1393 = vunpack.c.l.b16 %v1226
    %v1394 = vunpack.c.l.b16 %v1227
    %v1395 = vunpack.c.l.b16 %v1228
    %v1396 = vunpack.c.l.b16 %v1229
    %v1397 = vunpack.c.l.b16 %v1230
    %v1398 = vunpack.c.l.b16 %v1231
    %v1399 = vunpack.c.l.b16 %v1232
    %v1400 = vunpack.c.l.b16 %v1233
    %v1401 = vunpack.c.l.b16 %v1234
    %v1402 = vunpack.c.l.b16 %v1235
    %v1403 = vunpack.c.l.b16 %v1236
    %v1404 = vunpack.c.l.b16 %v1237
    %v1405 = vunpack.c.l.b16 %v1238
    %v1406 = vunpack.c.l.b16 %v1239
    %v1407 = vunpack.c.l.b16 %v1240
    %v1408 = vunpack.c.l.b16 %v1241
    %v1409 = vunpack.c.l.b16 %v1242
    %v1410 = vunpack.c.l.b16 %v1243
    %v1411 = vunpack.c.l.b16 %v1244
    %v1412 = vunpack.c.l.b16 %v1245
    %v1413 = vunpack.c.l.b16 %v1246
    %v1414 = vunpack.c.l.b16 %v1247
    %v1415 = vunpack.c.l.b16 %v1248
    %v1416 = vunpack.c.l.b16 %v1249
    %v1417 = vunpack.c.l.b16 %v1250
    %v1418 = vunpack.c.l.b16 %v1251
    %v1419 = vunpack.c.l.b16 %v1252
    %v1420 = vunpack.c.l.b16 %v1253
    %v1421 = vunpack.c.l.b16 %v1254
    %v1422 = vunpack.c.l.b16 %v1255
    %v1423 = vunpack.c.l.b16 %v1256
    %v1424 = vunpack.c.l.b16 %v1257
    %v1425 = vunpack.c.l.b16 %v1258
    %v1426 = vunpack.c.l.b16 %v1259
    %v1427 = vunpack.c.l.b16 %v1260
    %v1428 = vunpack.c.l.b16 %v1261
    %v1429 = vunpack.c.l.b16 %v1262
    %v1430 = vunpack.c.l.b16 %v1263
    %v1431 = vunpack.c.l.b16 %v1264
    %v1432 = vunpack.c.l.b16 %v1265
    %v1433 = vpack.c.b16 %v1354, %v1353
    %v1434 = vpack.c.b16 %v1356, %v1355
    %v1435 = vpack.c.b16 %v1358, %v1357
    %v1436 = vpack.c.b16 %v1360, %v1359
    %v1437 = vpack.c.b16 %v1362, %v1361
    %v1438 = vpack.c.b16 %v1364, %v1363
    %v1439 = vpack.c.b16 %v1366, %v1365
    %v1440 = vpack.c.b16 %v1368, %v1367
    %v1441 = vpack.c.b16 %v1370, %v1369
    %v1442 = vpack.c.b16 %v1372, %v1371
    %v1443 = vpack.c.b16 %v1374, %v1373
    %v1444 = vpack.c.b16 %v1376, %v1375
    %v1445 = vpack.c.b16 %v1378, %v1377
    %v1446 = vpack.c.b16 %v1380, %v1379
    %v1447 = vpack.c.b16 %v1382, %v1381
    %v1448 = vpack.c.b16 %v1384, %v1383
    %v1449 = vpack.c.b16 %v1386, %v1385
    %v1450 = vpack.c.b16 %v1388, %v1387
    %v1451 = vpack.c.b16 %v1390, %v1389
    %v1452 = vpack.c.b16 %v1392, %v1391
    %v1453 = vpack.c.b16 %v1394, %v1393
    %v1454 = vpack.c.b16 %v1396, %v1395
    %v1455 = vpack.c.b16 %v1398, %v1397
    %v1456 = vpack.c.b16 %v1400, %v1399
    %v1457 = vpack.c.b16 %v1402, %v1401
    %v1458 = vpack.c.b16 %v1404, %v1403
    %v1459 = vpack.c.b16 %v1406, %v1405
    %v1460 = vpack.c.b16 %v1408, %v1407
    %v1461 = vpack.c.b16 %v1410, %v1409
    %v1462 = vpack.c.b16 %v1412, %v1411
    %v1463 = vpack.c.b16 %v1414, %v1413
    %v1464 = vpack.c.b16 %v1416, %v1415
    %v1465 = vpack.c.b16 %v1418, %v1417
    %v1466 = vpack.c.b16 %v1420, %v1419
    %v1467 = vpack.c.b16 %v1422, %v1421
    %v1468 = vpack.c.b16 %v1424, %v1423
    %v1469 = vpack.c.b16 %v1426, %v1425
    %v1470 = vpack.c.b16 %v1428, %v1427
    %v1471 = vpack.c.b16 %v1430, %v1429
    %v1472 = vpack.c.b16 %v1432, %v1431
    %1513 = vmatprep.subr.bf16.mxu0 0
    %1514 = vmatpush1.bf16.msra.mxu0 %v1433
    %1515 = vmatprep.subr.bf16.mxu0 0
    %1516 = vmatpush1.bf16.msra.mxu0 %v1434
    %1517 = vmatprep.subr.bf16.mxu0 0
    %1518 = vmatpush1.bf16.msra.mxu0 %v1435
    %1519 = vmatprep.subr.bf16.mxu0 0
    %1520 = vmatpush1.bf16.msra.mxu0 %v1436
    %1521 = vmatprep.subr.bf16.mxu0 0
    %1522 = vmatpush1.bf16.msra.mxu0 %v1437
    %1523 = vmatprep.subr.bf16.mxu0 0
    %1524 = vmatpush1.bf16.msra.mxu0 %v1438
    %1525 = vmatprep.subr.bf16.mxu0 0
    %1526 = vmatpush1.bf16.msra.mxu0 %v1439
    %1527 = vmatprep.subr.bf16.mxu0 0
    %1528 = vmatpush1.bf16.msra.mxu0 %v1440
    %1529 = vmatprep.subr.bf16.mxu0 0
    %1530 = vmatpush1.bf16.msra.mxu0 %v1441
    %1531 = vmatprep.subr.bf16.mxu0 0
    %1532 = vmatpush1.bf16.msra.mxu0 %v1442
    %1533 = vmatprep.subr.bf16.mxu0 0
    %1534 = vmatpush1.bf16.msra.mxu0 %v1443
    %1535 = vmatprep.subr.bf16.mxu0 0
    %1536 = vmatpush1.bf16.msra.mxu0 %v1444
    %1537 = vmatprep.subr.bf16.mxu0 0
    %1538 = vmatpush1.bf16.msra.mxu0 %v1445
    %1539 = vmatprep.subr.bf16.mxu0 0
    %1540 = vmatpush1.bf16.msra.mxu0 %v1446
    %1541 = vmatprep.subr.bf16.mxu0 0
    %1542 = vmatpush1.bf16.msra.mxu0 %v1447
    %1543 = vmatprep.subr.bf16.mxu0 0
    %1544 = vmatpush1.bf16.msra.mxu0 %v1448
    %1545 = vmatprep.mubr.bf16.mxu0 %v1182
    %1546 = vmatmul.mubr.bf16.gmra.mrb[0].mxu0 %v1181
    %v1547 = vpop.f32.mrb[0].mxu0
    %v1548 = vadd.f32 %v1271, %v1547
    %v1549 = vpop.f32.mrb[0].mxu0
    %v1550 = vpop.f32.mrb[0].mxu0
    %v1551 = vpop.f32.mrb[0].mxu0
    %1552 = vdwg.mxu0
    %1553 = vmatprep.subr.bf16.mxu0 0
    %1554 = vmatpush1.bf16.msra.mxu0 %v1449
    %1555 = vmatprep.subr.bf16.mxu0 0
    %1556 = vmatpush1.bf16.msra.mxu0 %v1450
    %1557 = vmatprep.subr.bf16.mxu0 0
    %1558 = vmatpush1.bf16.msra.mxu0 %v1451
    %1559 = vmatprep.subr.bf16.mxu0 0
    %1560 = vmatpush1.bf16.msra.mxu0 %v1452
    %1561 = vmatprep.subr.bf16.mxu0 0
    %1562 = vmatpush1.bf16.msra.mxu0 %v1453
    %1563 = vmatprep.subr.bf16.mxu0 0
    %1564 = vmatpush1.bf16.msra.mxu0 %v1454
    %1565 = vmatprep.subr.bf16.mxu0 0
    %1566 = vmatpush1.bf16.msra.mxu0 %v1455
    %1567 = vmatprep.subr.bf16.mxu0 0
    %1568 = vmatpush1.bf16.msra.mxu0 %v1456
    %1569 = vmatprep.subr.bf16.mxu0 0
    %1570 = vmatpush1.bf16.msra.mxu0 %v1457
    %1571 = vmatprep.subr.bf16.mxu0 0
    %1572 = vmatpush1.bf16.msra.mxu0 %v1458
    %1573 = vmatprep.subr.bf16.mxu0 0
    %1574 = vmatpush1.bf16.msra.mxu0 %v1459
    %1575 = vmatprep.subr.bf16.mxu0 0
    %1576 = vmatpush1.bf16.msra.mxu0 %v1460
    %1577 = vmatprep.subr.bf16.mxu0 0
    %1578 = vmatpush1.bf16.msra.mxu0 %v1461
    %1579 = vmatprep.subr.bf16.mxu0 0
    %1580 = vmatpush1.bf16.msra.mxu0 %v1462
    %1581 = vmatprep.subr.bf16.mxu0 0
    %1582 = vmatpush1.bf16.msra.mxu0 %v1463
    %1583 = vmatprep.subr.bf16.mxu0 0
    %1584 = vmatpush1.bf16.msra.mxu0 %v1464
    %1585 = vmatprep.mubr.bf16.mxu0 %v1184
    %1586 = vmatmul.mubr.bf16.gmra.mrb[0].mxu0 %v1183
    %v1587 = vpop.f32.mrb[0].mxu0
    %v1588 = vadd.f32 %v1548, %v1587
    %v1589 = vpop.f32.mrb[0].mxu0
    %v1590 = vpop.f32.mrb[0].mxu0
    %v1591 = vpop.f32.mrb[0].mxu0
    %1592 = vdwg.mxu0
    %1593 = vmatprep.subr.bf16.mxu0 0
    %1594 = vmatpush1.bf16.msra.mxu0 %v1465
    %1595 = vmatprep.subr.bf16.mxu0 0
    %1596 = vmatpush1.bf16.msra.mxu0 %v1466
    %1597 = vmatprep.subr.bf16.mxu0 0
    %1598 = vmatpush1.bf16.msra.mxu0 %v1467
    %1599 = vmatprep.subr.bf16.mxu0 0
    %1600 = vmatpush1.bf16.msra.mxu0 %v1468
    %1601 = vmatprep.subr.bf16.mxu0 0
    %1602 = vmatpush1.bf16.msra.mxu0 %v1469
    %1603 = vmatprep.subr.bf16.mxu0 0
    %1604 = vmatpush1.bf16.msra.mxu0 %v1470
    %1605 = vmatprep.subr.bf16.mxu0 0
    %1606 = vmatpush1.bf16.msra.mxu0 %v1471
    %1607 = vmatprep.subr.bf16.mxu0 0
    %1608 = vmatpush1.bf16.msra.mxu0 %v1472
    %1609 = vmatprep.subr.bf16.mxu0 0
    %1610 = vmatpush1.bf16.msra.mxu0 0
    %1611 = vmatprep.subr.bf16.mxu0 0
    %1612 = vmatpush1.bf16.msra.mxu0 0
    %1613 = vmatprep.subr.bf16.mxu0 0
    %1614 = vmatpush1.bf16.msra.mxu0 0
    %1615 = vmatprep.subr.bf16.mxu0 0
    %1616 = vmatpush1.bf16.msra.mxu0 0
    %1617 = vmatprep.subr.bf16.mxu0 0
    %1618 = vmatpush1.bf16.msra.mxu0 0
    %1619 = vmatprep.subr.bf16.mxu0 0
    %1620 = vmatpush1.bf16.msra.mxu0 0
    %1621 = vmatprep.subr.bf16.mxu0 0
    %1622 = vmatpush1.bf16.msra.mxu0 0
    %1623 = vmatprep.subr.bf16.mxu0 0
    %1624 = vmatpush1.bf16.msra.mxu0 0
    %1625 = vmatprep.mubr.bf16.mxu0 0
    %1626 = vmatmul.mubr.bf16.gmra.mrb[0].mxu0 %v1185
    %v1627 = vpop.f32.mrb[0].mxu0
    %v1628 = vadd.f32 %v1588, %v1627
    %v1629 = vpop.f32.mrb[0].mxu0
    %v1630 = vpop.f32.mrb[0].mxu0
    %v1631 = vpop.f32.mrb[0].mxu0
    %1632 = vdwg.mxu0
    %v1633 = vmax.f32 %v1628, 0.0
    %v1634 = vpack.c.bf16 %v1633, %v1633
    %v1635 = vld [vmem:[%s7] sm:$0xf]
    %v1636 = vld [vmem:[%s7 + $0x4] sm:$0xf]
    %v1637 = vld [vmem:[%s7 + $0x8] sm:$0xf]
    %v1638 = vld [vmem:[%s7 + $0xc] sm:$0xf]
    %v1639 = vld [vmem:[%s7 + $0x10] sm:$0xf]
    %v1640 = vld [vmem:[%s7 + $0x14] sm:$0xf]
    %v1641 = vld [vmem:[%s7 + $0x18] sm:$0xf]
    %v1642 = vld [vmem:[%s7 + $0x1c] sm:$0xf]
    %v1643 = vld [vmem:[%s8] sm:$0x1]
    %v1645 = vlaneseq
    %v1646 = vshrl.u32 %v1645, 7
    %v1647 = vsub.s32 0, %v1646
    %v1648 = vrot.slane %v1643, %v1647
    %v1658 = vunpack.c.l.b16 %v1635
    %v1659 = vunpack.c.l.b16 %v1636
    %v1660 = vunpack.c.l.b16 %v1637
    %v1661 = vunpack.c.l.b16 %v1638
    %v1662 = vunpack.c.l.b16 %v1639
    %v1663 = vunpack.c.l.b16 %v1640
    %v1664 = vunpack.c.l.b16 %v1641
    %v1665 = vunpack.c.l.b16 %v1642
    %v1666 = vpack.c.b16 %v1659, %v1658
    %v1667 = vpack.c.b16 %v1661, %v1660
    %v1668 = vpack.c.b16 %v1663, %v1662
    %v1669 = vpack.c.b16 %v1665, %v1664
    %vm1674 = vcmask 523264
    %v1676 = vsel %vm1674, %v1634, 0
    %1678 = vmatprep.subr.bf16.mxu0 0
    %1679 = vmatpush1.bf16.msra.mxu0 %v1666
    %1680 = vmatprep.subr.bf16.mxu0 0
    %1681 = vmatpush1.bf16.msra.mxu0 %v1667
    %1682 = vmatprep.subr.bf16.mxu0 0
    %1683 = vmatpush1.bf16.msra.mxu0 %v1668
    %1684 = vmatprep.subr.bf16.mxu0 0
    %1685 = vmatpush1.bf16.msra.mxu0 %v1669
    %1686 = vmatprep.subr.bf16.mxu0 0
    %1687 = vmatpush1.bf16.msra.mxu0 0
    %1688 = vmatprep.subr.bf16.mxu0 0
    %1689 = vmatpush1.bf16.msra.mxu0 0
    %1690 = vmatprep.subr.bf16.mxu0 0
    %1691 = vmatpush1.bf16.msra.mxu0 0
    %1692 = vmatprep.subr.bf16.mxu0 0
    %1693 = vmatpush1.bf16.msra.mxu0 0
    %1694 = vmatprep.subr.bf16.mxu0 0
    %1695 = vmatpush1.bf16.msra.mxu0 0
    %1696 = vmatprep.subr.bf16.mxu0 0
    %1697 = vmatpush1.bf16.msra.mxu0 0
    %1698 = vmatprep.subr.bf16.mxu0 0
    %1699 = vmatpush1.bf16.msra.mxu0 0
    %1700 = vmatprep.subr.bf16.mxu0 0
    %1701 = vmatpush1.bf16.msra.mxu0 0
    %1702 = vmatprep.subr.bf16.mxu0 0
    %1703 = vmatpush1.bf16.msra.mxu0 0
    %1704 = vmatprep.subr.bf16.mxu0 0
    %1705 = vmatpush1.bf16.msra.mxu0 0
    %1706 = vmatprep.subr.bf16.mxu0 0
    %1707 = vmatpush1.bf16.msra.mxu0 0
    %1708 = vmatprep.subr.bf16.mxu0 0
    %1709 = vmatpush1.bf16.msra.mxu0 0
    %1710 = vmatprep.mubr.bf16.mxu0 0
    %1711 = vmatmul.mubr.bf16.gmra.mrb[0].mxu0 %v1676
    %v1712 = vpop.f32.mrb[0].mxu0
    %v1713 = vadd.f32 %v1648, %v1712
    %v1714 = vpop.f32.mrb[0].mxu0
    %v1715 = vpop.f32.mrb[0].mxu0
    %v1716 = vpop.f32.mrb[0].mxu0
    %1717 = vdwg.mxu0
    %1718 = vst [vmem:[%s9] sm:$0xff] %v1713
    // Predicated region
    $region42: #{curve_cnn_forward.1} parent=1 // pred_check
      _
    $region43: #{curve_cnn_forward.1} parent=1 // pred_check_branch
      %1720 = sbr.rel (0) target = $region45
    $region44: #{curve_cnn_forward.1} parent=1 // pred_region
      _
    $region45: #{curve_cnn_forward.1} parent=1 // pred_fallthru
      _
    // Predicated region
    $region46: #{curve_cnn_forward.1} parent=1 // pred_check
      _
    $region47: #{curve_cnn_forward.1} parent=1 // pred_check_branch
      %1722 = sbr.rel (0) target = $region49
    $region48: #{curve_cnn_forward.1} parent=1 // pred_region
      _
    $region49: #{curve_cnn_forward.1} parent=1 // pred_fallthru
      _
    %1723 = vsyncpa [#allocation3], 1

</llo_original>
